<compile_context>
chip_gen: v5e
topology: v5e:2x2
jax: 0.10.0
libtpu: 0.0.40
codegen_flags: <defaults>
</compile_context>

<pallas_src>
import functools

import jax
import jax.numpy as jnp
from jax import lax
from jax.experimental import pallas as pl
from jax.experimental.pallas import tpu as pltpu

# ----- problem sizes (small, consistent with connection.Linear(N_in, N_out)) -----
B = 2        # batch of pre-synaptic spike vectors
N_IN = 32    # pre neurons
N_OUT = 16   # post neurons

# ----- module hyper-parameters (from the docstring example) -----
TAU_PRE = 10.0
TAU_POST = 10.0
LR = 1e-3
AMPLITUDE = 0.5     # tf.SpikeCurrent amplitude
R = 50.0            # IFNode membrane resistance
V_TH = 1.0          # IFNode threshold
V_RESET = 0.0       # IFNode reset potential
F_W_EPS = 1e-6      # default f_w = |w| + 1e-6


def f_w(w):
    return jnp.abs(w) + F_W_EPS


def _stdp_seq_kernel(pre_ref,                                           # [CHUNK, B, N_IN]
                     tr_pre_in, tr_post_in, w_in, d1_in, d2_in, v_in,   # initial state
                     spike_out,                                         # [CHUNK, N_OUT, B]
                     tr_pre_o, tr_post_o, w_o, d1_o, d2_o, v_o):        # resident state
    # Initialize the VMEM-resident state (output accumulator blocks) once.
    @pl.when(pl.program_id(0) == 0)
    def _init():
        tr_pre_o[...] = tr_pre_in[...]
        tr_post_o[...] = tr_post_in[...]
        w_o[...] = w_in[...]
        d1_o[...] = d1_in[...]
        d2_o[...] = d2_in[...]
        v_o[...] = v_in[...]

    chunk = pre_ref.shape[0]
    # Statically-unrolled inner loop over the timesteps of this chunk
    # (all indices constant -> simple static loads/stores for the compiler).
    for s in range(chunk):
        pre = pre_ref[s]                       # [B, N_IN]  (0/1 float)
        tr_pre = tr_pre_o[...]                 # [B, N_IN]
        tr_post = tr_post_o[...]               # [N_OUT, B] (OLD trace_post)
        w = w_o[...]                           # [N_OUT, N_IN]

        # 1) pre-trace update: trace_pre += -trace_pre/tau_pre + pre_spike
        tr_pre = tr_pre - tr_pre / TAU_PRE + pre
        tr_pre_o[...] = tr_pre

        # 2) depression with OLD trace_post:
        #    dw[o,i] = -lr * f_w(w)[o,i] * mean_b(trace_post[b,o])
        #    trace_post is kept as [N_OUT, B] -> lane reduce over B + lane broadcast (VPU/XLU).
        post_mean = jnp.sum(tr_post, axis=1, keepdims=True) * (1.0 / B)   # [N_OUT, 1]
        w = w - LR * (jnp.abs(w) + F_W_EPS) * post_mean

        # 3) tf.SpikeCurrent: current = amplitude * pre_spike
        cur = AMPLITUDE * pre

        # 4) ConstantDelay(1): emit last step's current, queue this step's
        delayed_cur = d1_o[...]
        d1_o[...] = cur

        # 5) connection.Linear: i_syn[o,b] = sum_i w[o,i] * delayed_cur[b,i]
        i_syn = lax.dot_general(w, delayed_cur, (((1,), (1,)), ((), ())),
                                preferred_element_type=jnp.float32)        # [N_OUT, B]

        # 6) ConstantDelay(1) on the synaptic current
        delayed_i = d2_o[...]
        d2_o[...] = i_syn

        # 7) IFNode: v += r*i ; spike = v >= v_th ; v[spike] = v_reset
        v_new = v_o[...] + R * delayed_i                                   # [N_OUT, B]
        spike = v_new >= V_TH
        v_o[...] = jnp.where(spike, jnp.float32(V_RESET), v_new)
        spike_f = spike.astype(jnp.float32)
        spike_out[s] = spike_f                                             # [N_OUT, B]

        # 8) post-trace update: trace_post += -trace_post/tau_post + post_spike
        tr_post_o[...] = tr_post - tr_post / TAU_POST + spike_f

        # 9) potentiation with NEW trace_pre:
        #    dw[o,i] = +lr * f_w(w1)[o,i] * mean_b(trace_pre[b,i])
        #    [B, N_IN] -> sublane reduce over B + sublane broadcast (VPU/XLU).
        pre_mean = jnp.sum(tr_pre, axis=0, keepdims=True) * (1.0 / B)      # [1, N_IN]
        w_o[...] = w + LR * (jnp.abs(w) + F_W_EPS) * pre_mean


@functools.partial(jax.jit, static_argnames=("chunk",))
def stdp_run(spikes, state, *, chunk=8):
    """Run the whole pre-spike train through the STDP module in one Pallas call.

    spikes: [T, B, N_IN] float32 (0/1), T must be a multiple of `chunk`.
    state:  (trace_pre [B,N_IN], trace_post [B,N_OUT], w [N_OUT,N_IN],
             delay1 [B,N_IN], delay2 [B,N_OUT], v [B,N_OUT])
    returns: (post_spikes [T, B, N_OUT], new_state)
    """
    tr_pre, tr_post, w, d1, d2, v = state
    T = spikes.shape[0]
    assert T % chunk == 0, "T must be a multiple of chunk"
    n_chunks = T // chunk

    # In-kernel layout keeps post-side state transposed ([N_OUT, B]) so both STDP
    # means are tiny reductions over B with zero in-kernel transposes.
    tr_post_t, d2_t, v_t = tr_post.T, d2.T, v.T

    def state_spec(r, c):
        return pl.BlockSpec((r, c), lambda t: (0, 0))   # constant index -> VMEM resident

    outs = pl.pallas_call(
        _stdp_seq_kernel,
        grid=(n_chunks,),
        in_specs=[
            pl.BlockSpec((chunk, B, N_IN), lambda t: (t, 0, 0)),   # streamed spike train
            state_spec(B, N_IN),      # trace_pre (initial)
            state_spec(N_OUT, B),     # trace_post (initial, transposed)
            state_spec(N_OUT, N_IN),  # w (initial)
            state_spec(B, N_IN),      # delay1 (initial)
            state_spec(N_OUT, B),     # delay2 (initial, transposed)
            state_spec(N_OUT, B),     # v (initial, transposed)
        ],
        out_specs=(
            pl.BlockSpec((chunk, N_OUT, B), lambda t: (t, 0, 0)),  # per-chunk spike writeback
            state_spec(B, N_IN),
            state_spec(N_OUT, B),
            state_spec(N_OUT, N_IN),
            state_spec(B, N_IN),
            state_spec(N_OUT, B),
            state_spec(N_OUT, B),
        ),
        out_shape=(
            jax.ShapeDtypeStruct((T, N_OUT, B), jnp.float32),      # post spikes (transposed)
            jax.ShapeDtypeStruct((B, N_IN), jnp.float32),          # trace_pre (final)
            jax.ShapeDtypeStruct((N_OUT, B), jnp.float32),         # trace_post (final, T)
            jax.ShapeDtypeStruct((N_OUT, N_IN), jnp.float32),      # w (final)
            jax.ShapeDtypeStruct((B, N_IN), jnp.float32),          # delay1 (final)
            jax.ShapeDtypeStruct((N_OUT, B), jnp.float32),         # delay2 (final, T)
            jax.ShapeDtypeStruct((N_OUT, B), jnp.float32),         # v (final, T)
        ),
        compiler_params=pltpu.CompilerParams(
            dimension_semantics=("arbitrary",)),                   # sequential time axis
    )(spikes, tr_pre, tr_post_t, w, d1, d2_t, v_t)

    post_spikes = jnp.transpose(outs[0], (0, 2, 1))                # [T, B, N_OUT]
    tr_pre_f, tr_post_tf, w_f, d1_f, d2_tf, v_tf = outs[1:]
    return post_spikes, (tr_pre_f, tr_post_tf.T, w_f, d1_f, d2_tf.T, v_tf.T)


@jax.jit
def stdp_step_ref(pre_spike, state):
    """Pure-JAX single-step reference of the same forward semantics."""
    tr_pre, tr_post, w, d1, d2, v = state
    tr_pre = tr_pre - tr_pre / TAU_PRE + pre_spike
    w = w - LR * f_w(w) * jnp.mean(tr_post, axis=0)[:, None]
    cur = AMPLITUDE * pre_spike
    delayed_cur, d1 = d1, cur
    i_syn = delayed_cur @ w.T
    delayed_i, d2 = d2, i_syn
    v = v + R * delayed_i
    spike = (v >= V_TH)
    v = jnp.where(spike, V_RESET, v)
    spike_f = spike.astype(jnp.float32)
    tr_post = tr_post - tr_post / TAU_POST + spike_f
    w = w + LR * f_w(w) * jnp.mean(tr_pre, axis=0)[None, :]
    return spike_f, (tr_pre, tr_post, w, d1, d2, v)


def init_state(key):
    # connection.Linear initializes w ~ U[0, 1) with shape [out_num, in_num]
    w = jax.random.uniform(key, (N_OUT, N_IN), dtype=jnp.float32)
    z_in = jnp.zeros((B, N_IN), jnp.float32)
    z_out = jnp.zeros((B, N_OUT), jnp.float32)
    # trace_pre / trace_post start as scalar 0 in PyTorch; zeros are numerically identical
    return (z_in, z_out, w, z_in, z_out, z_out)


if __name__ == "__main__":
    key = jax.random.PRNGKey(0)
    kw, kx = jax.random.split(key)
    state0 = init_state(kw)

    T = 64
    spikes = (jax.random.uniform(kx, (T, B, N_IN)) < 0.5).astype(jnp.float32)

    # single fused kernel call over the whole spike train
    out, state = stdp_run(spikes, state0, chunk=8)
    jax.block_until_ready((out, state))

    # verify against the pure-JAX per-step reference
    state_ref = state0
    outs_ref = []
    for t in range(T):
        o, state_ref = stdp_step_ref(spikes[t], state_ref)
        outs_ref.append(o)
    out_ref = jnp.stack(outs_ref, axis=0)

    assert out.shape == (T, B, N_OUT)
    assert jnp.allclose(out, out_ref, atol=1e-4), "post_spike mismatch"
    for a, b_ref in zip(state, state_ref):
        assert jnp.allclose(a, b_ref, atol=1e-4), "state mismatch"

    print("KERNEL_OK")
</pallas_src>

<mosaic_0001>
module attributes {stable_mosaic.version = 11 : i64} {
  func.func @_stdp_seq_kernel(%arg0: i32, %arg1: memref<8x2x32xf32, #tpu.memory_space<vmem>>, %arg2: memref<2x32xf32, #tpu.memory_space<vmem>>, %arg3: memref<16x2xf32, #tpu.memory_space<vmem>>, %arg4: memref<16x32xf32, #tpu.memory_space<vmem>>, %arg5: memref<2x32xf32, #tpu.memory_space<vmem>>, %arg6: memref<16x2xf32, #tpu.memory_space<vmem>>, %arg7: memref<16x2xf32, #tpu.memory_space<vmem>>, %arg8: memref<8x16x2xf32, #tpu.memory_space<vmem>>, %arg9: memref<2x32xf32, #tpu.memory_space<vmem>>, %arg10: memref<16x2xf32, #tpu.memory_space<vmem>>, %arg11: memref<16x32xf32, #tpu.memory_space<vmem>>, %arg12: memref<2x32xf32, #tpu.memory_space<vmem>>, %arg13: memref<16x2xf32, #tpu.memory_space<vmem>>, %arg14: memref<16x2xf32, #tpu.memory_space<vmem>>) attributes {dimension_semantics = [#tpu.dimension_semantics<arbitrary>], iteration_bounds = array<i64: 8>, scalar_prefetch = 0 : i64, scratch_operands = 0 : i64, tpu.core_type = #tpu.core_type<tc>, window_params = [{transform_indices = @transform_0, window_bounds = array<i64: 8, 2, 32>}, {pipeline_mode = #tpu.pipeline_mode<synchronous>, transform_indices = @transform_1, window_bounds = array<i64: 2, 32>}, {pipeline_mode = #tpu.pipeline_mode<synchronous>, transform_indices = @transform_2, window_bounds = array<i64: 16, 2>}, {pipeline_mode = #tpu.pipeline_mode<synchronous>, transform_indices = @transform_3, window_bounds = array<i64: 16, 32>}, {pipeline_mode = #tpu.pipeline_mode<synchronous>, transform_indices = @transform_4, window_bounds = array<i64: 2, 32>}, {pipeline_mode = #tpu.pipeline_mode<synchronous>, transform_indices = @transform_5, window_bounds = array<i64: 16, 2>}, {pipeline_mode = #tpu.pipeline_mode<synchronous>, transform_indices = @transform_6, window_bounds = array<i64: 16, 2>}, {transform_indices = @transform_7, window_bounds = array<i64: 8, 16, 2>}, {pipeline_mode = #tpu.pipeline_mode<synchronous>, transform_indices = @transform_8, window_bounds = array<i64: 2, 32>}, {pipeline_mode = #tpu.pipeline_mode<synchronous>, transform_indices = @transform_9, window_bounds = array<i64: 16, 2>}, {pipeline_mode = #tpu.pipeline_mode<synchronous>, transform_indices = @transform_10, window_bounds = array<i64: 16, 32>}, {pipeline_mode = #tpu.pipeline_mode<synchronous>, transform_indices = @transform_11, window_bounds = array<i64: 2, 32>}, {pipeline_mode = #tpu.pipeline_mode<synchronous>, transform_indices = @transform_12, window_bounds = array<i64: 16, 2>}, {pipeline_mode = #tpu.pipeline_mode<synchronous>, transform_indices = @transform_13, window_bounds = array<i64: 16, 2>}]} {
    %c0_i32 = arith.constant 0 : i32
    %0 = arith.cmpi eq, %arg0, %c0_i32 : i32
    %1 = arith.extui %0 : i1 to i32
    %c0_i32_0 = arith.constant 0 : i32
    %2 = arith.cmpi ne, %1, %c0_i32_0 : i32
    scf.if %2 {
      %c0_352 = arith.constant 0 : index
      %c0_353 = arith.constant 0 : index
      %491 = vector.load %arg2[%c0_352, %c0_353] : memref<2x32xf32, #tpu.memory_space<vmem>>, vector<2x32xf32>
      %c0_354 = arith.constant 0 : index
      %c0_355 = arith.constant 0 : index
      %492 = vector.load %arg9[%c0_354, %c0_355] : memref<2x32xf32, #tpu.memory_space<vmem>>, vector<2x32xf32>
      tpu.vector_store %arg9[%c0_354, %c0_355], %491 {strides = array<i32>} : memref<2x32xf32, #tpu.memory_space<vmem>>, vector<2x32xf32>,
      %c0_356 = arith.constant 0 : index
      %c0_357 = arith.constant 0 : index
      %493 = vector.load %arg3[%c0_356, %c0_357] : memref<16x2xf32, #tpu.memory_space<vmem>>, vector<16x2xf32>
      %c0_358 = arith.constant 0 : index
      %c0_359 = arith.constant 0 : index
      %494 = vector.load %arg10[%c0_358, %c0_359] : memref<16x2xf32, #tpu.memory_space<vmem>>, vector<16x2xf32>
      tpu.vector_store %arg10[%c0_358, %c0_359], %493 {strides = array<i32>} : memref<16x2xf32, #tpu.memory_space<vmem>>, vector<16x2xf32>,
      %c0_360 = arith.constant 0 : index
      %c0_361 = arith.constant 0 : index
      %495 = vector.load %arg4[%c0_360, %c0_361] : memref<16x32xf32, #tpu.memory_space<vmem>>, vector<16x32xf32>
      %c0_362 = arith.constant 0 : index
      %c0_363 = arith.constant 0 : index
      %496 = vector.load %arg11[%c0_362, %c0_363] : memref<16x32xf32, #tpu.memory_space<vmem>>, vector<16x32xf32>
      tpu.vector_store %arg11[%c0_362, %c0_363], %495 {strides = array<i32>} : memref<16x32xf32, #tpu.memory_space<vmem>>, vector<16x32xf32>,
      %c0_364 = arith.constant 0 : index
      %c0_365 = arith.constant 0 : index
      %497 = vector.load %arg5[%c0_364, %c0_365] : memref<2x32xf32, #tpu.memory_space<vmem>>, vector<2x32xf32>
      %c0_366 = arith.constant 0 : index
      %c0_367 = arith.constant 0 : index
      %498 = vector.load %arg12[%c0_366, %c0_367] : memref<2x32xf32, #tpu.memory_space<vmem>>, vector<2x32xf32>
      tpu.vector_store %arg12[%c0_366, %c0_367], %497 {strides = array<i32>} : memref<2x32xf32, #tpu.memory_space<vmem>>, vector<2x32xf32>,
      %c0_368 = arith.constant 0 : index
      %c0_369 = arith.constant 0 : index
      %499 = vector.load %arg6[%c0_368, %c0_369] : memref<16x2xf32, #tpu.memory_space<vmem>>, vector<16x2xf32>
      %c0_370 = arith.constant 0 : index
      %c0_371 = arith.constant 0 : index
      %500 = vector.load %arg13[%c0_370, %c0_371] : memref<16x2xf32, #tpu.memory_space<vmem>>, vector<16x2xf32>
      tpu.vector_store %arg13[%c0_370, %c0_371], %499 {strides = array<i32>} : memref<16x2xf32, #tpu.memory_space<vmem>>, vector<16x2xf32>,
      %c0_372 = arith.constant 0 : index
      %c0_373 = arith.constant 0 : index
      %501 = vector.load %arg7[%c0_372, %c0_373] : memref<16x2xf32, #tpu.memory_space<vmem>>, vector<16x2xf32>
      %c0_374 = arith.constant 0 : index
      %c0_375 = arith.constant 0 : index
      %502 = vector.load %arg14[%c0_374, %c0_375] : memref<16x2xf32, #tpu.memory_space<vmem>>, vector<16x2xf32>
      tpu.vector_store %arg14[%c0_374, %c0_375], %501 {strides = array<i32>} : memref<16x2xf32, #tpu.memory_space<vmem>>, vector<16x2xf32>,
    } else {
    }
    %c0 = arith.constant 0 : index
    %c0_1 = arith.constant 0 : index
    %c0_2 = arith.constant 0 : index
    %3 = vector.load %arg1[%c0, %c0_1, %c0_2] : memref<8x2x32xf32, #tpu.memory_space<vmem>>, vector<1x2x32xf32>
    %4 = vector.shape_cast %3 : vector<1x2x32xf32> to vector<2x32xf32>
    %c0_3 = arith.constant 0 : index
    %c0_4 = arith.constant 0 : index
    %5 = vector.load %arg9[%c0_3, %c0_4] : memref<2x32xf32, #tpu.memory_space<vmem>>, vector<2x32xf32>
    %c0_5 = arith.constant 0 : index
    %c0_6 = arith.constant 0 : index
    %6 = vector.load %arg10[%c0_5, %c0_6] : memref<16x2xf32, #tpu.memory_space<vmem>>, vector<16x2xf32>
    %c0_7 = arith.constant 0 : index
    %c0_8 = arith.constant 0 : index
    %7 = vector.load %arg11[%c0_7, %c0_8] : memref<16x32xf32, #tpu.memory_space<vmem>>, vector<16x32xf32>
    %cst = arith.constant 1.000000e+01 : f32
    %8 = vector.broadcast %cst : f32 to vector<2x32xf32>
    %9 = arith.divf %5, %8 : vector<2x32xf32>
    %10 = arith.subf %5, %9 : vector<2x32xf32>
    %11 = arith.addf %10, %4 : vector<2x32xf32>
    %c0_9 = arith.constant 0 : index
    %c0_10 = arith.constant 0 : index
    %12 = vector.load %arg9[%c0_9, %c0_10] : memref<2x32xf32, #tpu.memory_space<vmem>>, vector<2x32xf32>
    tpu.vector_store %arg9[%c0_9, %c0_10], %11 {strides = array<i32>} : memref<2x32xf32, #tpu.memory_space<vmem>>, vector<2x32xf32>,
    %cst_11 = arith.constant dense<0.000000e+00> : vector<16xf32>
    %13 = vector.multi_reduction <add>, %6, %cst_11 [1] : vector<16x2xf32> to vector<16xf32>
    %14 = vector.shape_cast %13 : vector<16xf32> to vector<16x1xf32>
    %cst_12 = arith.constant 5.000000e-01 : f32
    %15 = vector.broadcast %cst_12 : f32 to vector<16x1xf32>
    %16 = arith.mulf %14, %15 : vector<16x1xf32>
    %17 = math.absf %7 : vector<16x32xf32>
    %cst_13 = arith.constant 9.99999997E-7 : f32
    %18 = vector.broadcast %cst_13 : f32 to vector<16x32xf32>
    %19 = arith.addf %17, %18 : vector<16x32xf32>
    %cst_14 = arith.constant 1.000000e-03 : f32
    %20 = vector.broadcast %cst_14 : f32 to vector<16x32xf32>
    %21 = arith.mulf %20, %19 : vector<16x32xf32>
    %22 = vector.broadcast %16 : vector<16x1xf32> to vector<16x32xf32>
    %23 = arith.mulf %21, %22 : vector<16x32xf32>
    %24 = arith.subf %7, %23 : vector<16x32xf32>
    %cst_15 = arith.constant 5.000000e-01 : f32
    %25 = vector.broadcast %cst_15 : f32 to vector<2x32xf32>
    %26 = arith.mulf %25, %4 : vector<2x32xf32>
    %c0_16 = arith.constant 0 : index
    %c0_17 = arith.constant 0 : index
    %27 = vector.load %arg12[%c0_16, %c0_17] : memref<2x32xf32, #tpu.memory_space<vmem>>, vector<2x32xf32>
    %c0_18 = arith.constant 0 : index
    %c0_19 = arith.constant 0 : index
    %28 = vector.load %arg12[%c0_18, %c0_19] : memref<2x32xf32, #tpu.memory_space<vmem>>, vector<2x32xf32>
    tpu.vector_store %arg12[%c0_18, %c0_19], %26 {strides = array<i32>} : memref<2x32xf32, #tpu.memory_space<vmem>>, vector<2x32xf32>,
    %cst_20 = arith.constant dense<0.000000e+00> : vector<16x2xf32>
    %29 = tpu.matmul %24, %27, %cst_20 {dimension_numbers = #tpu.dot_dimension_numbers<[1], [1], [0], [0], [0, 0, 1, 0], [], []>} : vector<16x32xf32>, vector<2x32xf32>, vector<16x2xf32> -> vector<16x2xf32>
    %c0_21 = arith.constant 0 : index
    %c0_22 = arith.constant 0 : index
    %30 = vector.load %arg13[%c0_21, %c0_22] : memref<16x2xf32, #tpu.memory_space<vmem>>, vector<16x2xf32>
    %c0_23 = arith.constant 0 : index
    %c0_24 = arith.constant 0 : index
    %31 = vector.load %arg13[%c0_23, %c0_24] : memref<16x2xf32, #tpu.memory_space<vmem>>, vector<16x2xf32>
    tpu.vector_store %arg13[%c0_23, %c0_24], %29 {strides = array<i32>} : memref<16x2xf32, #tpu.memory_space<vmem>>, vector<16x2xf32>,
    %c0_25 = arith.constant 0 : index
    %c0_26 = arith.constant 0 : index
    %32 = vector.load %arg14[%c0_25, %c0_26] : memref<16x2xf32, #tpu.memory_space<vmem>>, vector<16x2xf32>
    %cst_27 = arith.constant 5.000000e+01 : f32
    %33 = vector.broadcast %cst_27 : f32 to vector<16x2xf32>
    %34 = arith.mulf %33, %30 : vector<16x2xf32>
    %35 = arith.addf %32, %34 : vector<16x2xf32>
    %cst_28 = arith.constant 1.000000e+00 : f32
    %36 = vector.broadcast %cst_28 : f32 to vector<16x2xf32>
    %37 = arith.cmpf oge, %35, %36 : vector<16x2xf32>
    %cst_29 = arith.constant 0.000000e+00 : f32
    %38 = vector.broadcast %cst_29 : f32 to vector<16x2xf32>
    %39 = arith.select %37, %38, %35 : vector<16x2xi1>, vector<16x2xf32>
    %c0_30 = arith.constant 0 : index
    %c0_31 = arith.constant 0 : index
    %40 = vector.load %arg14[%c0_30, %c0_31] : memref<16x2xf32, #tpu.memory_space<vmem>>, vector<16x2xf32>
    tpu.vector_store %arg14[%c0_30, %c0_31], %39 {strides = array<i32>} : memref<16x2xf32, #tpu.memory_space<vmem>>, vector<16x2xf32>,
    %41 = arith.extui %37 : vector<16x2xi1> to vector<16x2xi32>
    %42 = arith.sitofp %41 : vector<16x2xi32> to vector<16x2xf32>
    %c0_32 = arith.constant 0 : index
    %c0_33 = arith.constant 0 : index
    %c0_34 = arith.constant 0 : index
    %43 = vector.load %arg8[%c0_32, %c0_33, %c0_34] : memref<8x16x2xf32, #tpu.memory_space<vmem>>, vector<1x16x2xf32>
    %44 = vector.shape_cast %43 : vector<1x16x2xf32> to vector<16x2xf32>
    %45 = vector.shape_cast %42 : vector<16x2xf32> to vector<1x16x2xf32>
    tpu.vector_store %arg8[%c0_32, %c0_33, %c0_34], %45 {strides = array<i32>} : memref<8x16x2xf32, #tpu.memory_space<vmem>>, vector<1x16x2xf32>,
    %cst_35 = arith.constant 1.000000e+01 : f32
    %46 = vector.broadcast %cst_35 : f32 to vector<16x2xf32>
    %47 = arith.divf %6, %46 : vector<16x2xf32>
    %48 = arith.subf %6, %47 : vector<16x2xf32>
    %49 = arith.addf %48, %42 : vector<16x2xf32>
    %c0_36 = arith.constant 0 : index
    %c0_37 = arith.constant 0 : index
    %50 = vector.load %arg10[%c0_36, %c0_37] : memref<16x2xf32, #tpu.memory_space<vmem>>, vector<16x2xf32>
    tpu.vector_store %arg10[%c0_36, %c0_37], %49 {strides = array<i32>} : memref<16x2xf32, #tpu.memory_space<vmem>>, vector<16x2xf32>,
    %cst_38 = arith.constant dense<0.000000e+00> : vector<32xf32>
    %51 = vector.multi_reduction <add>, %11, %cst_38 [0] : vector<2x32xf32> to vector<32xf32>
    %52 = vector.shape_cast %51 : vector<32xf32> to vector<1x32xf32>
    %cst_39 = arith.constant 5.000000e-01 : f32
    %53 = vector.broadcast %cst_39 : f32 to vector<1x32xf32>
    %54 = arith.mulf %52, %53 : vector<1x32xf32>
    %55 = math.absf %24 : vector<16x32xf32>
    %cst_40 = arith.constant 9.99999997E-7 : f32
    %56 = vector.broadcast %cst_40 : f32 to vector<16x32xf32>
    %57 = arith.addf %55, %56 : vector<16x32xf32>
    %cst_41 = arith.constant 1.000000e-03 : f32
    %58 = vector.broadcast %cst_41 : f32 to vector<16x32xf32>
    %59 = arith.mulf %58, %57 : vector<16x32xf32>
    %60 = vector.broadcast %54 : vector<1x32xf32> to vector<16x32xf32>
    %61 = arith.mulf %59, %60 : vector<16x32xf32>
    %62 = arith.addf %24, %61 : vector<16x32xf32>
    %c0_42 = arith.constant 0 : index
    %c0_43 = arith.constant 0 : index
    %63 = vector.load %arg11[%c0_42, %c0_43] : memref<16x32xf32, #tpu.memory_space<vmem>>, vector<16x32xf32>
    tpu.vector_store %arg11[%c0_42, %c0_43], %62 {strides = array<i32>} : memref<16x32xf32, #tpu.memory_space<vmem>>, vector<16x32xf32>,
    %c1 = arith.constant 1 : index
    %c0_44 = arith.constant 0 : index
    %c0_45 = arith.constant 0 : index
    %64 = vector.load %arg1[%c1, %c0_44, %c0_45] : memref<8x2x32xf32, #tpu.memory_space<vmem>>, vector<1x2x32xf32>
    %65 = vector.shape_cast %64 : vector<1x2x32xf32> to vector<2x32xf32>
    %c0_46 = arith.constant 0 : index
    %c0_47 = arith.constant 0 : index
    %66 = vector.load %arg9[%c0_46, %c0_47] : memref<2x32xf32, #tpu.memory_space<vmem>>, vector<2x32xf32>
    %c0_48 = arith.constant 0 : index
    %c0_49 = arith.constant 0 : index
    %67 = vector.load %arg10[%c0_48, %c0_49] : memref<16x2xf32, #tpu.memory_space<vmem>>, vector<16x2xf32>
    %c0_50 = arith.constant 0 : index
    %c0_51 = arith.constant 0 : index
    %68 = vector.load %arg11[%c0_50, %c0_51] : memref<16x32xf32, #tpu.memory_space<vmem>>, vector<16x32xf32>
    %cst_52 = arith.constant 1.000000e+01 : f32
    %69 = vector.broadcast %cst_52 : f32 to vector<2x32xf32>
    %70 = arith.divf %66, %69 : vector<2x32xf32>
    %71 = arith.subf %66, %70 : vector<2x32xf32>
    %72 = arith.addf %71, %65 : vector<2x32xf32>
    %c0_53 = arith.constant 0 : index
    %c0_54 = arith.constant 0 : index
    %73 = vector.load %arg9[%c0_53, %c0_54] : memref<2x32xf32, #tpu.memory_space<vmem>>, vector<2x32xf32>
    tpu.vector_store %arg9[%c0_53, %c0_54], %72 {strides = array<i32>} : memref<2x32xf32, #tpu.memory_space<vmem>>, vector<2x32xf32>,
    %cst_55 = arith.constant dense<0.000000e+00> : vector<16xf32>
    %74 = vector.multi_reduction <add>, %67, %cst_55 [1] : vector<16x2xf32> to vector<16xf32>
    %75 = vector.shape_cast %74 : vector<16xf32> to vector<16x1xf32>
    %cst_56 = arith.constant 5.000000e-01 : f32
    %76 = vector.broadcast %cst_56 : f32 to vector<16x1xf32>
    %77 = arith.mulf %75, %76 : vector<16x1xf32>
    %78 = math.absf %68 : vector<16x32xf32>
    %cst_57 = arith.constant 9.99999997E-7 : f32
    %79 = vector.broadcast %cst_57 : f32 to vector<16x32xf32>
    %80 = arith.addf %78, %79 : vector<16x32xf32>
    %cst_58 = arith.constant 1.000000e-03 : f32
    %81 = vector.broadcast %cst_58 : f32 to vector<16x32xf32>
    %82 = arith.mulf %81, %80 : vector<16x32xf32>
    %83 = vector.broadcast %77 : vector<16x1xf32> to vector<16x32xf32>
    %84 = arith.mulf %82, %83 : vector<16x32xf32>
    %85 = arith.subf %68, %84 : vector<16x32xf32>
    %cst_59 = arith.constant 5.000000e-01 : f32
    %86 = vector.broadcast %cst_59 : f32 to vector<2x32xf32>
    %87 = arith.mulf %86, %65 : vector<2x32xf32>
    %c0_60 = arith.constant 0 : index
    %c0_61 = arith.constant 0 : index
    %88 = vector.load %arg12[%c0_60, %c0_61] : memref<2x32xf32, #tpu.memory_space<vmem>>, vector<2x32xf32>
    %c0_62 = arith.constant 0 : index
    %c0_63 = arith.constant 0 : index
    %89 = vector.load %arg12[%c0_62, %c0_63] : memref<2x32xf32, #tpu.memory_space<vmem>>, vector<2x32xf32>
    tpu.vector_store %arg12[%c0_62, %c0_63], %87 {strides = array<i32>} : memref<2x32xf32, #tpu.memory_space<vmem>>, vector<2x32xf32>,
    %cst_64 = arith.constant dense<0.000000e+00> : vector<16x2xf32>
    %90 = tpu.matmul %85, %88, %cst_64 {dimension_numbers = #tpu.dot_dimension_numbers<[1], [1], [0], [0], [0, 0, 1, 0], [], []>} : vector<16x32xf32>, vector<2x32xf32>, vector<16x2xf32> -> vector<16x2xf32>
    %c0_65 = arith.constant 0 : index
    %c0_66 = arith.constant 0 : index
    %91 = vector.load %arg13[%c0_65, %c0_66] : memref<16x2xf32, #tpu.memory_space<vmem>>, vector<16x2xf32>
    %c0_67 = arith.constant 0 : index
    %c0_68 = arith.constant 0 : index
    %92 = vector.load %arg13[%c0_67, %c0_68] : memref<16x2xf32, #tpu.memory_space<vmem>>, vector<16x2xf32>
    tpu.vector_store %arg13[%c0_67, %c0_68], %90 {strides = array<i32>} : memref<16x2xf32, #tpu.memory_space<vmem>>, vector<16x2xf32>,
    %c0_69 = arith.constant 0 : index
    %c0_70 = arith.constant 0 : index
    %93 = vector.load %arg14[%c0_69, %c0_70] : memref<16x2xf32, #tpu.memory_space<vmem>>, vector<16x2xf32>
    %cst_71 = arith.constant 5.000000e+01 : f32
    %94 = vector.broadcast %cst_71 : f32 to vector<16x2xf32>
    %95 = arith.mulf %94, %91 : vector<16x2xf32>
    %96 = arith.addf %93, %95 : vector<16x2xf32>
    %cst_72 = arith.constant 1.000000e+00 : f32
    %97 = vector.broadcast %cst_72 : f32 to vector<16x2xf32>
    %98 = arith.cmpf oge, %96, %97 : vector<16x2xf32>
    %cst_73 = arith.constant 0.000000e+00 : f32
    %99 = vector.broadcast %cst_73 : f32 to vector<16x2xf32>
    %100 = arith.select %98, %99, %96 : vector<16x2xi1>, vector<16x2xf32>
    %c0_74 = arith.constant 0 : index
    %c0_75 = arith.constant 0 : index
    %101 = vector.load %arg14[%c0_74, %c0_75] : memref<16x2xf32, #tpu.memory_space<vmem>>, vector<16x2xf32>
    tpu.vector_store %arg14[%c0_74, %c0_75], %100 {strides = array<i32>} : memref<16x2xf32, #tpu.memory_space<vmem>>, vector<16x2xf32>,
    %102 = arith.extui %98 : vector<16x2xi1> to vector<16x2xi32>
    %103 = arith.sitofp %102 : vector<16x2xi32> to vector<16x2xf32>
    %c1_76 = arith.constant 1 : index
    %c0_77 = arith.constant 0 : index
    %c0_78 = arith.constant 0 : index
    %104 = vector.load %arg8[%c1_76, %c0_77, %c0_78] : memref<8x16x2xf32, #tpu.memory_space<vmem>>, vector<1x16x2xf32>
    %105 = vector.shape_cast %104 : vector<1x16x2xf32> to vector<16x2xf32>
    %106 = vector.shape_cast %103 : vector<16x2xf32> to vector<1x16x2xf32>
    tpu.vector_store %arg8[%c1_76, %c0_77, %c0_78], %106 {strides = array<i32>} : memref<8x16x2xf32, #tpu.memory_space<vmem>>, vector<1x16x2xf32>,
    %cst_79 = arith.constant 1.000000e+01 : f32
    %107 = vector.broadcast %cst_79 : f32 to vector<16x2xf32>
    %108 = arith.divf %67, %107 : vector<16x2xf32>
    %109 = arith.subf %67, %108 : vector<16x2xf32>
    %110 = arith.addf %109, %103 : vector<16x2xf32>
    %c0_80 = arith.constant 0 : index
    %c0_81 = arith.constant 0 : index
    %111 = vector.load %arg10[%c0_80, %c0_81] : memref<16x2xf32, #tpu.memory_space<vmem>>, vector<16x2xf32>
    tpu.vector_store %arg10[%c0_80, %c0_81], %110 {strides = array<i32>} : memref<16x2xf32, #tpu.memory_space<vmem>>, vector<16x2xf32>,
    %cst_82 = arith.constant dense<0.000000e+00> : vector<32xf32>
    %112 = vector.multi_reduction <add>, %72, %cst_82 [0] : vector<2x32xf32> to vector<32xf32>
    %113 = vector.shape_cast %112 : vector<32xf32> to vector<1x32xf32>
    %cst_83 = arith.constant 5.000000e-01 : f32
    %114 = vector.broadcast %cst_83 : f32 to vector<1x32xf32>
    %115 = arith.mulf %113, %114 : vector<1x32xf32>
    %116 = math.absf %85 : vector<16x32xf32>
    %cst_84 = arith.constant 9.99999997E-7 : f32
    %117 = vector.broadcast %cst_84 : f32 to vector<16x32xf32>
    %118 = arith.addf %116, %117 : vector<16x32xf32>
    %cst_85 = arith.constant 1.000000e-03 : f32
    %119 = vector.broadcast %cst_85 : f32 to vector<16x32xf32>
    %120 = arith.mulf %119, %118 : vector<16x32xf32>
    %121 = vector.broadcast %115 : vector<1x32xf32> to vector<16x32xf32>
    %122 = arith.mulf %120, %121 : vector<16x32xf32>
    %123 = arith.addf %85, %122 : vector<16x32xf32>
    %c0_86 = arith.constant 0 : index
    %c0_87 = arith.constant 0 : index
    %124 = vector.load %arg11[%c0_86, %c0_87] : memref<16x32xf32, #tpu.memory_space<vmem>>, vector<16x32xf32>
    tpu.vector_store %arg11[%c0_86, %c0_87], %123 {strides = array<i32>} : memref<16x32xf32, #tpu.memory_space<vmem>>, vector<16x32xf32>,
    %c2 = arith.constant 2 : index
    %c0_88 = arith.constant 0 : index
    %c0_89 = arith.constant 0 : index
    %125 = vector.load %arg1[%c2, %c0_88, %c0_89] : memref<8x2x32xf32, #tpu.memory_space<vmem>>, vector<1x2x32xf32>
    %126 = vector.shape_cast %125 : vector<1x2x32xf32> to vector<2x32xf32>
    %c0_90 = arith.constant 0 : index
    %c0_91 = arith.constant 0 : index
    %127 = vector.load %arg9[%c0_90, %c0_91] : memref<2x32xf32, #tpu.memory_space<vmem>>, vector<2x32xf32>
    %c0_92 = arith.constant 0 : index
    %c0_93 = arith.constant 0 : index
    %128 = vector.load %arg10[%c0_92, %c0_93] : memref<16x2xf32, #tpu.memory_space<vmem>>, vector<16x2xf32>
    %c0_94 = arith.constant 0 : index
    %c0_95 = arith.constant 0 : index
    %129 = vector.load %arg11[%c0_94, %c0_95] : memref<16x32xf32, #tpu.memory_space<vmem>>, vector<16x32xf32>
    %cst_96 = arith.constant 1.000000e+01 : f32
    %130 = vector.broadcast %cst_96 : f32 to vector<2x32xf32>
    %131 = arith.divf %127, %130 : vector<2x32xf32>
    %132 = arith.subf %127, %131 : vector<2x32xf32>
    %133 = arith.addf %132, %126 : vector<2x32xf32>
    %c0_97 = arith.constant 0 : index
    %c0_98 = arith.constant 0 : index
    %134 = vector.load %arg9[%c0_97, %c0_98] : memref<2x32xf32, #tpu.memory_space<vmem>>, vector<2x32xf32>
    tpu.vector_store %arg9[%c0_97, %c0_98], %133 {strides = array<i32>} : memref<2x32xf32, #tpu.memory_space<vmem>>, vector<2x32xf32>,
    %cst_99 = arith.constant dense<0.000000e+00> : vector<16xf32>
    %135 = vector.multi_reduction <add>, %128, %cst_99 [1] : vector<16x2xf32> to vector<16xf32>
    %136 = vector.shape_cast %135 : vector<16xf32> to vector<16x1xf32>
    %cst_100 = arith.constant 5.000000e-01 : f32
    %137 = vector.broadcast %cst_100 : f32 to vector<16x1xf32>
    %138 = arith.mulf %136, %137 : vector<16x1xf32>
    %139 = math.absf %129 : vector<16x32xf32>
    %cst_101 = arith.constant 9.99999997E-7 : f32
    %140 = vector.broadcast %cst_101 : f32 to vector<16x32xf32>
    %141 = arith.addf %139, %140 : vector<16x32xf32>
    %cst_102 = arith.constant 1.000000e-03 : f32
    %142 = vector.broadcast %cst_102 : f32 to vector<16x32xf32>
    %143 = arith.mulf %142, %141 : vector<16x32xf32>
    %144 = vector.broadcast %138 : vector<16x1xf32> to vector<16x32xf32>
    %145 = arith.mulf %143, %144 : vector<16x32xf32>
    %146 = arith.subf %129, %145 : vector<16x32xf32>
    %cst_103 = arith.constant 5.000000e-01 : f32
    %147 = vector.broadcast %cst_103 : f32 to vector<2x32xf32>
    %148 = arith.mulf %147, %126 : vector<2x32xf32>
    %c0_104 = arith.constant 0 : index
    %c0_105 = arith.constant 0 : index
    %149 = vector.load %arg12[%c0_104, %c0_105] : memref<2x32xf32, #tpu.memory_space<vmem>>, vector<2x32xf32>
    %c0_106 = arith.constant 0 : index
    %c0_107 = arith.constant 0 : index
    %150 = vector.load %arg12[%c0_106, %c0_107] : memref<2x32xf32, #tpu.memory_space<vmem>>, vector<2x32xf32>
    tpu.vector_store %arg12[%c0_106, %c0_107], %148 {strides = array<i32>} : memref<2x32xf32, #tpu.memory_space<vmem>>, vector<2x32xf32>,
    %cst_108 = arith.constant dense<0.000000e+00> : vector<16x2xf32>
    %151 = tpu.matmul %146, %149, %cst_108 {dimension_numbers = #tpu.dot_dimension_numbers<[1], [1], [0], [0], [0, 0, 1, 0], [], []>} : vector<16x32xf32>, vector<2x32xf32>, vector<16x2xf32> -> vector<16x2xf32>
    %c0_109 = arith.constant 0 : index
    %c0_110 = arith.constant 0 : index
    %152 = vector.load %arg13[%c0_109, %c0_110] : memref<16x2xf32, #tpu.memory_space<vmem>>, vector<16x2xf32>
    %c0_111 = arith.constant 0 : index
    %c0_112 = arith.constant 0 : index
    %153 = vector.load %arg13[%c0_111, %c0_112] : memref<16x2xf32, #tpu.memory_space<vmem>>, vector<16x2xf32>
    tpu.vector_store %arg13[%c0_111, %c0_112], %151 {strides = array<i32>} : memref<16x2xf32, #tpu.memory_space<vmem>>, vector<16x2xf32>,
    %c0_113 = arith.constant 0 : index
    %c0_114 = arith.constant 0 : index
    %154 = vector.load %arg14[%c0_113, %c0_114] : memref<16x2xf32, #tpu.memory_space<vmem>>, vector<16x2xf32>
    %cst_115 = arith.constant 5.000000e+01 : f32
    %155 = vector.broadcast %cst_115 : f32 to vector<16x2xf32>
    %156 = arith.mulf %155, %152 : vector<16x2xf32>
    %157 = arith.addf %154, %156 : vector<16x2xf32>
    %cst_116 = arith.constant 1.000000e+00 : f32
    %158 = vector.broadcast %cst_116 : f32 to vector<16x2xf32>
    %159 = arith.cmpf oge, %157, %158 : vector<16x2xf32>
    %cst_117 = arith.constant 0.000000e+00 : f32
    %160 = vector.broadcast %cst_117 : f32 to vector<16x2xf32>
    %161 = arith.select %159, %160, %157 : vector<16x2xi1>, vector<16x2xf32>
    %c0_118 = arith.constant 0 : index
    %c0_119 = arith.constant 0 : index
    %162 = vector.load %arg14[%c0_118, %c0_119] : memref<16x2xf32, #tpu.memory_space<vmem>>, vector<16x2xf32>
    tpu.vector_store %arg14[%c0_118, %c0_119], %161 {strides = array<i32>} : memref<16x2xf32, #tpu.memory_space<vmem>>, vector<16x2xf32>,
    %163 = arith.extui %159 : vector<16x2xi1> to vector<16x2xi32>
    %164 = arith.sitofp %163 : vector<16x2xi32> to vector<16x2xf32>
    %c2_120 = arith.constant 2 : index
    %c0_121 = arith.constant 0 : index
    %c0_122 = arith.constant 0 : index
    %165 = vector.load %arg8[%c2_120, %c0_121, %c0_122] : memref<8x16x2xf32, #tpu.memory_space<vmem>>, vector<1x16x2xf32>
    %166 = vector.shape_cast %165 : vector<1x16x2xf32> to vector<16x2xf32>
    %167 = vector.shape_cast %164 : vector<16x2xf32> to vector<1x16x2xf32>
    tpu.vector_store %arg8[%c2_120, %c0_121, %c0_122], %167 {strides = array<i32>} : memref<8x16x2xf32, #tpu.memory_space<vmem>>, vector<1x16x2xf32>,
    %cst_123 = arith.constant 1.000000e+01 : f32
    %168 = vector.broadcast %cst_123 : f32 to vector<16x2xf32>
    %169 = arith.divf %128, %168 : vector<16x2xf32>
    %170 = arith.subf %128, %169 : vector<16x2xf32>
    %171 = arith.addf %170, %164 : vector<16x2xf32>
    %c0_124 = arith.constant 0 : index
    %c0_125 = arith.constant 0 : index
    %172 = vector.load %arg10[%c0_124, %c0_125] : memref<16x2xf32, #tpu.memory_space<vmem>>, vector<16x2xf32>
    tpu.vector_store %arg10[%c0_124, %c0_125], %171 {strides = array<i32>} : memref<16x2xf32, #tpu.memory_space<vmem>>, vector<16x2xf32>,
    %cst_126 = arith.constant dense<0.000000e+00> : vector<32xf32>
    %173 = vector.multi_reduction <add>, %133, %cst_126 [0] : vector<2x32xf32> to vector<32xf32>
    %174 = vector.shape_cast %173 : vector<32xf32> to vector<1x32xf32>
    %cst_127 = arith.constant 5.000000e-01 : f32
    %175 = vector.broadcast %cst_127 : f32 to vector<1x32xf32>
    %176 = arith.mulf %174, %175 : vector<1x32xf32>
    %177 = math.absf %146 : vector<16x32xf32>
    %cst_128 = arith.constant 9.99999997E-7 : f32
    %178 = vector.broadcast %cst_128 : f32 to vector<16x32xf32>
    %179 = arith.addf %177, %178 : vector<16x32xf32>
    %cst_129 = arith.constant 1.000000e-03 : f32
    %180 = vector.broadcast %cst_129 : f32 to vector<16x32xf32>
    %181 = arith.mulf %180, %179 : vector<16x32xf32>
    %182 = vector.broadcast %176 : vector<1x32xf32> to vector<16x32xf32>
    %183 = arith.mulf %181, %182 : vector<16x32xf32>
    %184 = arith.addf %146, %183 : vector<16x32xf32>
    %c0_130 = arith.constant 0 : index
    %c0_131 = arith.constant 0 : index
    %185 = vector.load %arg11[%c0_130, %c0_131] : memref<16x32xf32, #tpu.memory_space<vmem>>, vector<16x32xf32>
    tpu.vector_store %arg11[%c0_130, %c0_131], %184 {strides = array<i32>} : memref<16x32xf32, #tpu.memory_space<vmem>>, vector<16x32xf32>,
    %c3 = arith.constant 3 : index
    %c0_132 = arith.constant 0 : index
    %c0_133 = arith.constant 0 : index
    %186 = vector.load %arg1[%c3, %c0_132, %c0_133] : memref<8x2x32xf32, #tpu.memory_space<vmem>>, vector<1x2x32xf32>
    %187 = vector.shape_cast %186 : vector<1x2x32xf32> to vector<2x32xf32>
    %c0_134 = arith.constant 0 : index
    %c0_135 = arith.constant 0 : index
    %188 = vector.load %arg9[%c0_134, %c0_135] : memref<2x32xf32, #tpu.memory_space<vmem>>, vector<2x32xf32>
    %c0_136 = arith.constant 0 : index
    %c0_137 = arith.constant 0 : index
    %189 = vector.load %arg10[%c0_136, %c0_137] : memref<16x2xf32, #tpu.memory_space<vmem>>, vector<16x2xf32>
    %c0_138 = arith.constant 0 : index
    %c0_139 = arith.constant 0 : index
    %190 = vector.load %arg11[%c0_138, %c0_139] : memref<16x32xf32, #tpu.memory_space<vmem>>, vector<16x32xf32>
    %cst_140 = arith.constant 1.000000e+01 : f32
    %191 = vector.broadcast %cst_140 : f32 to vector<2x32xf32>
    %192 = arith.divf %188, %191 : vector<2x32xf32>
    %193 = arith.subf %188, %192 : vector<2x32xf32>
    %194 = arith.addf %193, %187 : vector<2x32xf32>
    %c0_141 = arith.constant 0 : index
    %c0_142 = arith.constant 0 : index
    %195 = vector.load %arg9[%c0_141, %c0_142] : memref<2x32xf32, #tpu.memory_space<vmem>>, vector<2x32xf32>
    tpu.vector_store %arg9[%c0_141, %c0_142], %194 {strides = array<i32>} : memref<2x32xf32, #tpu.memory_space<vmem>>, vector<2x32xf32>,
    %cst_143 = arith.constant dense<0.000000e+00> : vector<16xf32>
    %196 = vector.multi_reduction <add>, %189, %cst_143 [1] : vector<16x2xf32> to vector<16xf32>
    %197 = vector.shape_cast %196 : vector<16xf32> to vector<16x1xf32>
    %cst_144 = arith.constant 5.000000e-01 : f32
    %198 = vector.broadcast %cst_144 : f32 to vector<16x1xf32>
    %199 = arith.mulf %197, %198 : vector<16x1xf32>
    %200 = math.absf %190 : vector<16x32xf32>
    %cst_145 = arith.constant 9.99999997E-7 : f32
    %201 = vector.broadcast %cst_145 : f32 to vector<16x32xf32>
    %202 = arith.addf %200, %201 : vector<16x32xf32>
    %cst_146 = arith.constant 1.000000e-03 : f32
    %203 = vector.broadcast %cst_146 : f32 to vector<16x32xf32>
    %204 = arith.mulf %203, %202 : vector<16x32xf32>
    %205 = vector.broadcast %199 : vector<16x1xf32> to vector<16x32xf32>
    %206 = arith.mulf %204, %205 : vector<16x32xf32>
    %207 = arith.subf %190, %206 : vector<16x32xf32>
    %cst_147 = arith.constant 5.000000e-01 : f32
    %208 = vector.broadcast %cst_147 : f32 to vector<2x32xf32>
    %209 = arith.mulf %208, %187 : vector<2x32xf32>
    %c0_148 = arith.constant 0 : index
    %c0_149 = arith.constant 0 : index
    %210 = vector.load %arg12[%c0_148, %c0_149] : memref<2x32xf32, #tpu.memory_space<vmem>>, vector<2x32xf32>
    %c0_150 = arith.constant 0 : index
    %c0_151 = arith.constant 0 : index
    %211 = vector.load %arg12[%c0_150, %c0_151] : memref<2x32xf32, #tpu.memory_space<vmem>>, vector<2x32xf32>
    tpu.vector_store %arg12[%c0_150, %c0_151], %209 {strides = array<i32>} : memref<2x32xf32, #tpu.memory_space<vmem>>, vector<2x32xf32>,
    %cst_152 = arith.constant dense<0.000000e+00> : vector<16x2xf32>
    %212 = tpu.matmul %207, %210, %cst_152 {dimension_numbers = #tpu.dot_dimension_numbers<[1], [1], [0], [0], [0, 0, 1, 0], [], []>} : vector<16x32xf32>, vector<2x32xf32>, vector<16x2xf32> -> vector<16x2xf32>
    %c0_153 = arith.constant 0 : index
    %c0_154 = arith.constant 0 : index
    %213 = vector.load %arg13[%c0_153, %c0_154] : memref<16x2xf32, #tpu.memory_space<vmem>>, vector<16x2xf32>
    %c0_155 = arith.constant 0 : index
    %c0_156 = arith.constant 0 : index
    %214 = vector.load %arg13[%c0_155, %c0_156] : memref<16x2xf32, #tpu.memory_space<vmem>>, vector<16x2xf32>
    tpu.vector_store %arg13[%c0_155, %c0_156], %212 {strides = array<i32>} : memref<16x2xf32, #tpu.memory_space<vmem>>, vector<16x2xf32>,
    %c0_157 = arith.constant 0 : index
    %c0_158 = arith.constant 0 : index
    %215 = vector.load %arg14[%c0_157, %c0_158] : memref<16x2xf32, #tpu.memory_space<vmem>>, vector<16x2xf32>
    %cst_159 = arith.constant 5.000000e+01 : f32
    %216 = vector.broadcast %cst_159 : f32 to vector<16x2xf32>
    %217 = arith.mulf %216, %213 : vector<16x2xf32>
    %218 = arith.addf %215, %217 : vector<16x2xf32>
    %cst_160 = arith.constant 1.000000e+00 : f32
    %219 = vector.broadcast %cst_160 : f32 to vector<16x2xf32>
    %220 = arith.cmpf oge, %218, %219 : vector<16x2xf32>
    %cst_161 = arith.constant 0.000000e+00 : f32
    %221 = vector.broadcast %cst_161 : f32 to vector<16x2xf32>
    %222 = arith.select %220, %221, %218 : vector<16x2xi1>, vector<16x2xf32>
    %c0_162 = arith.constant 0 : index
    %c0_163 = arith.constant 0 : index
    %223 = vector.load %arg14[%c0_162, %c0_163] : memref<16x2xf32, #tpu.memory_space<vmem>>, vector<16x2xf32>
    tpu.vector_store %arg14[%c0_162, %c0_163], %222 {strides = array<i32>} : memref<16x2xf32, #tpu.memory_space<vmem>>, vector<16x2xf32>,
    %224 = arith.extui %220 : vector<16x2xi1> to vector<16x2xi32>
    %225 = arith.sitofp %224 : vector<16x2xi32> to vector<16x2xf32>
    %c3_164 = arith.constant 3 : index
    %c0_165 = arith.constant 0 : index
    %c0_166 = arith.constant 0 : index
    %226 = vector.load %arg8[%c3_164, %c0_165, %c0_166] : memref<8x16x2xf32, #tpu.memory_space<vmem>>, vector<1x16x2xf32>
    %227 = vector.shape_cast %226 : vector<1x16x2xf32> to vector<16x2xf32>
    %228 = vector.shape_cast %225 : vector<16x2xf32> to vector<1x16x2xf32>
    tpu.vector_store %arg8[%c3_164, %c0_165, %c0_166], %228 {strides = array<i32>} : memref<8x16x2xf32, #tpu.memory_space<vmem>>, vector<1x16x2xf32>,
    %cst_167 = arith.constant 1.000000e+01 : f32
    %229 = vector.broadcast %cst_167 : f32 to vector<16x2xf32>
    %230 = arith.divf %189, %229 : vector<16x2xf32>
    %231 = arith.subf %189, %230 : vector<16x2xf32>
    %232 = arith.addf %231, %225 : vector<16x2xf32>
    %c0_168 = arith.constant 0 : index
    %c0_169 = arith.constant 0 : index
    %233 = vector.load %arg10[%c0_168, %c0_169] : memref<16x2xf32, #tpu.memory_space<vmem>>, vector<16x2xf32>
    tpu.vector_store %arg10[%c0_168, %c0_169], %232 {strides = array<i32>} : memref<16x2xf32, #tpu.memory_space<vmem>>, vector<16x2xf32>,
    %cst_170 = arith.constant dense<0.000000e+00> : vector<32xf32>
    %234 = vector.multi_reduction <add>, %194, %cst_170 [0] : vector<2x32xf32> to vector<32xf32>
    %235 = vector.shape_cast %234 : vector<32xf32> to vector<1x32xf32>
    %cst_171 = arith.constant 5.000000e-01 : f32
    %236 = vector.broadcast %cst_171 : f32 to vector<1x32xf32>
    %237 = arith.mulf %235, %236 : vector<1x32xf32>
    %238 = math.absf %207 : vector<16x32xf32>
    %cst_172 = arith.constant 9.99999997E-7 : f32
    %239 = vector.broadcast %cst_172 : f32 to vector<16x32xf32>
    %240 = arith.addf %238, %239 : vector<16x32xf32>
    %cst_173 = arith.constant 1.000000e-03 : f32
    %241 = vector.broadcast %cst_173 : f32 to vector<16x32xf32>
    %242 = arith.mulf %241, %240 : vector<16x32xf32>
    %243 = vector.broadcast %237 : vector<1x32xf32> to vector<16x32xf32>
    %244 = arith.mulf %242, %243 : vector<16x32xf32>
    %245 = arith.addf %207, %244 : vector<16x32xf32>
    %c0_174 = arith.constant 0 : index
    %c0_175 = arith.constant 0 : index
    %246 = vector.load %arg11[%c0_174, %c0_175] : memref<16x32xf32, #tpu.memory_space<vmem>>, vector<16x32xf32>
    tpu.vector_store %arg11[%c0_174, %c0_175], %245 {strides = array<i32>} : memref<16x32xf32, #tpu.memory_space<vmem>>, vector<16x32xf32>,
    %c4 = arith.constant 4 : index
    %c0_176 = arith.constant 0 : index
    %c0_177 = arith.constant 0 : index
    %247 = vector.load %arg1[%c4, %c0_176, %c0_177] : memref<8x2x32xf32, #tpu.memory_space<vmem>>, vector<1x2x32xf32>
    %248 = vector.shape_cast %247 : vector<1x2x32xf32> to vector<2x32xf32>
    %c0_178 = arith.constant 0 : index
    %c0_179 = arith.constant 0 : index
    %249 = vector.load %arg9[%c0_178, %c0_179] : memref<2x32xf32, #tpu.memory_space<vmem>>, vector<2x32xf32>
    %c0_180 = arith.constant 0 : index
    %c0_181 = arith.constant 0 : index
    %250 = vector.load %arg10[%c0_180, %c0_181] : memref<16x2xf32, #tpu.memory_space<vmem>>, vector<16x2xf32>
    %c0_182 = arith.constant 0 : index
    %c0_183 = arith.constant 0 : index
    %251 = vector.load %arg11[%c0_182, %c0_183] : memref<16x32xf32, #tpu.memory_space<vmem>>, vector<16x32xf32>
    %cst_184 = arith.constant 1.000000e+01 : f32
    %252 = vector.broadcast %cst_184 : f32 to vector<2x32xf32>
    %253 = arith.divf %249, %252 : vector<2x32xf32>
    %254 = arith.subf %249, %253 : vector<2x32xf32>
    %255 = arith.addf %254, %248 : vector<2x32xf32>
    %c0_185 = arith.constant 0 : index
    %c0_186 = arith.constant 0 : index
    %256 = vector.load %arg9[%c0_185, %c0_186] : memref<2x32xf32, #tpu.memory_space<vmem>>, vector<2x32xf32>
    tpu.vector_store %arg9[%c0_185, %c0_186], %255 {strides = array<i32>} : memref<2x32xf32, #tpu.memory_space<vmem>>, vector<2x32xf32>,
    %cst_187 = arith.constant dense<0.000000e+00> : vector<16xf32>
    %257 = vector.multi_reduction <add>, %250, %cst_187 [1] : vector<16x2xf32> to vector<16xf32>
    %258 = vector.shape_cast %257 : vector<16xf32> to vector<16x1xf32>
    %cst_188 = arith.constant 5.000000e-01 : f32
    %259 = vector.broadcast %cst_188 : f32 to vector<16x1xf32>
    %260 = arith.mulf %258, %259 : vector<16x1xf32>
    %261 = math.absf %251 : vector<16x32xf32>
    %cst_189 = arith.constant 9.99999997E-7 : f32
    %262 = vector.broadcast %cst_189 : f32 to vector<16x32xf32>
    %263 = arith.addf %261, %262 : vector<16x32xf32>
    %cst_190 = arith.constant 1.000000e-03 : f32
    %264 = vector.broadcast %cst_190 : f32 to vector<16x32xf32>
    %265 = arith.mulf %264, %263 : vector<16x32xf32>
    %266 = vector.broadcast %260 : vector<16x1xf32> to vector<16x32xf32>
    %267 = arith.mulf %265, %266 : vector<16x32xf32>
    %268 = arith.subf %251, %267 : vector<16x32xf32>
    %cst_191 = arith.constant 5.000000e-01 : f32
    %269 = vector.broadcast %cst_191 : f32 to vector<2x32xf32>
    %270 = arith.mulf %269, %248 : vector<2x32xf32>
    %c0_192 = arith.constant 0 : index
    %c0_193 = arith.constant 0 : index
    %271 = vector.load %arg12[%c0_192, %c0_193] : memref<2x32xf32, #tpu.memory_space<vmem>>, vector<2x32xf32>
    %c0_194 = arith.constant 0 : index
    %c0_195 = arith.constant 0 : index
    %272 = vector.load %arg12[%c0_194, %c0_195] : memref<2x32xf32, #tpu.memory_space<vmem>>, vector<2x32xf32>
    tpu.vector_store %arg12[%c0_194, %c0_195], %270 {strides = array<i32>} : memref<2x32xf32, #tpu.memory_space<vmem>>, vector<2x32xf32>,
    %cst_196 = arith.constant dense<0.000000e+00> : vector<16x2xf32>
    %273 = tpu.matmul %268, %271, %cst_196 {dimension_numbers = #tpu.dot_dimension_numbers<[1], [1], [0], [0], [0, 0, 1, 0], [], []>} : vector<16x32xf32>, vector<2x32xf32>, vector<16x2xf32> -> vector<16x2xf32>
    %c0_197 = arith.constant 0 : index
    %c0_198 = arith.constant 0 : index
    %274 = vector.load %arg13[%c0_197, %c0_198] : memref<16x2xf32, #tpu.memory_space<vmem>>, vector<16x2xf32>
    %c0_199 = arith.constant 0 : index
    %c0_200 = arith.constant 0 : index
    %275 = vector.load %arg13[%c0_199, %c0_200] : memref<16x2xf32, #tpu.memory_space<vmem>>, vector<16x2xf32>
    tpu.vector_store %arg13[%c0_199, %c0_200], %273 {strides = array<i32>} : memref<16x2xf32, #tpu.memory_space<vmem>>, vector<16x2xf32>,
    %c0_201 = arith.constant 0 : index
    %c0_202 = arith.constant 0 : index
    %276 = vector.load %arg14[%c0_201, %c0_202] : memref<16x2xf32, #tpu.memory_space<vmem>>, vector<16x2xf32>
    %cst_203 = arith.constant 5.000000e+01 : f32
    %277 = vector.broadcast %cst_203 : f32 to vector<16x2xf32>
    %278 = arith.mulf %277, %274 : vector<16x2xf32>
    %279 = arith.addf %276, %278 : vector<16x2xf32>
    %cst_204 = arith.constant 1.000000e+00 : f32
    %280 = vector.broadcast %cst_204 : f32 to vector<16x2xf32>
    %281 = arith.cmpf oge, %279, %280 : vector<16x2xf32>
    %cst_205 = arith.constant 0.000000e+00 : f32
    %282 = vector.broadcast %cst_205 : f32 to vector<16x2xf32>
    %283 = arith.select %281, %282, %279 : vector<16x2xi1>, vector<16x2xf32>
    %c0_206 = arith.constant 0 : index
    %c0_207 = arith.constant 0 : index
    %284 = vector.load %arg14[%c0_206, %c0_207] : memref<16x2xf32, #tpu.memory_space<vmem>>, vector<16x2xf32>
    tpu.vector_store %arg14[%c0_206, %c0_207], %283 {strides = array<i32>} : memref<16x2xf32, #tpu.memory_space<vmem>>, vector<16x2xf32>,
    %285 = arith.extui %281 : vector<16x2xi1> to vector<16x2xi32>
    %286 = arith.sitofp %285 : vector<16x2xi32> to vector<16x2xf32>
    %c4_208 = arith.constant 4 : index
    %c0_209 = arith.constant 0 : index
    %c0_210 = arith.constant 0 : index
    %287 = vector.load %arg8[%c4_208, %c0_209, %c0_210] : memref<8x16x2xf32, #tpu.memory_space<vmem>>, vector<1x16x2xf32>
    %288 = vector.shape_cast %287 : vector<1x16x2xf32> to vector<16x2xf32>
    %289 = vector.shape_cast %286 : vector<16x2xf32> to vector<1x16x2xf32>
    tpu.vector_store %arg8[%c4_208, %c0_209, %c0_210], %289 {strides = array<i32>} : memref<8x16x2xf32, #tpu.memory_space<vmem>>, vector<1x16x2xf32>,
    %cst_211 = arith.constant 1.000000e+01 : f32
    %290 = vector.broadcast %cst_211 : f32 to vector<16x2xf32>
    %291 = arith.divf %250, %290 : vector<16x2xf32>
    %292 = arith.subf %250, %291 : vector<16x2xf32>
    %293 = arith.addf %292, %286 : vector<16x2xf32>
    %c0_212 = arith.constant 0 : index
    %c0_213 = arith.constant 0 : index
    %294 = vector.load %arg10[%c0_212, %c0_213] : memref<16x2xf32, #tpu.memory_space<vmem>>, vector<16x2xf32>
    tpu.vector_store %arg10[%c0_212, %c0_213], %293 {strides = array<i32>} : memref<16x2xf32, #tpu.memory_space<vmem>>, vector<16x2xf32>,
    %cst_214 = arith.constant dense<0.000000e+00> : vector<32xf32>
    %295 = vector.multi_reduction <add>, %255, %cst_214 [0] : vector<2x32xf32> to vector<32xf32>
    %296 = vector.shape_cast %295 : vector<32xf32> to vector<1x32xf32>
    %cst_215 = arith.constant 5.000000e-01 : f32
    %297 = vector.broadcast %cst_215 : f32 to vector<1x32xf32>
    %298 = arith.mulf %296, %297 : vector<1x32xf32>
    %299 = math.absf %268 : vector<16x32xf32>
    %cst_216 = arith.constant 9.99999997E-7 : f32
    %300 = vector.broadcast %cst_216 : f32 to vector<16x32xf32>
    %301 = arith.addf %299, %300 : vector<16x32xf32>
    %cst_217 = arith.constant 1.000000e-03 : f32
    %302 = vector.broadcast %cst_217 : f32 to vector<16x32xf32>
    %303 = arith.mulf %302, %301 : vector<16x32xf32>
    %304 = vector.broadcast %298 : vector<1x32xf32> to vector<16x32xf32>
    %305 = arith.mulf %303, %304 : vector<16x32xf32>
    %306 = arith.addf %268, %305 : vector<16x32xf32>
    %c0_218 = arith.constant 0 : index
    %c0_219 = arith.constant 0 : index
    %307 = vector.load %arg11[%c0_218, %c0_219] : memref<16x32xf32, #tpu.memory_space<vmem>>, vector<16x32xf32>
    tpu.vector_store %arg11[%c0_218, %c0_219], %306 {strides = array<i32>} : memref<16x32xf32, #tpu.memory_space<vmem>>, vector<16x32xf32>,
    %c5 = arith.constant 5 : index
    %c0_220 = arith.constant 0 : index
    %c0_221 = arith.constant 0 : index
    %308 = vector.load %arg1[%c5, %c0_220, %c0_221] : memref<8x2x32xf32, #tpu.memory_space<vmem>>, vector<1x2x32xf32>
    %309 = vector.shape_cast %308 : vector<1x2x32xf32> to vector<2x32xf32>
    %c0_222 = arith.constant 0 : index
    %c0_223 = arith.constant 0 : index
    %310 = vector.load %arg9[%c0_222, %c0_223] : memref<2x32xf32, #tpu.memory_space<vmem>>, vector<2x32xf32>
    %c0_224 = arith.constant 0 : index
    %c0_225 = arith.constant 0 : index
    %311 = vector.load %arg10[%c0_224, %c0_225] : memref<16x2xf32, #tpu.memory_space<vmem>>, vector<16x2xf32>
    %c0_226 = arith.constant 0 : index
    %c0_227 = arith.constant 0 : index
    %312 = vector.load %arg11[%c0_226, %c0_227] : memref<16x32xf32, #tpu.memory_space<vmem>>, vector<16x32xf32>
    %cst_228 = arith.constant 1.000000e+01 : f32
    %313 = vector.broadcast %cst_228 : f32 to vector<2x32xf32>
    %314 = arith.divf %310, %313 : vector<2x32xf32>
    %315 = arith.subf %310, %314 : vector<2x32xf32>
    %316 = arith.addf %315, %309 : vector<2x32xf32>
    %c0_229 = arith.constant 0 : index
    %c0_230 = arith.constant 0 : index
    %317 = vector.load %arg9[%c0_229, %c0_230] : memref<2x32xf32, #tpu.memory_space<vmem>>, vector<2x32xf32>
    tpu.vector_store %arg9[%c0_229, %c0_230], %316 {strides = array<i32>} : memref<2x32xf32, #tpu.memory_space<vmem>>, vector<2x32xf32>,
    %cst_231 = arith.constant dense<0.000000e+00> : vector<16xf32>
    %318 = vector.multi_reduction <add>, %311, %cst_231 [1] : vector<16x2xf32> to vector<16xf32>
    %319 = vector.shape_cast %318 : vector<16xf32> to vector<16x1xf32>
    %cst_232 = arith.constant 5.000000e-01 : f32
    %320 = vector.broadcast %cst_232 : f32 to vector<16x1xf32>
    %321 = arith.mulf %319, %320 : vector<16x1xf32>
    %322 = math.absf %312 : vector<16x32xf32>
    %cst_233 = arith.constant 9.99999997E-7 : f32
    %323 = vector.broadcast %cst_233 : f32 to vector<16x32xf32>
    %324 = arith.addf %322, %323 : vector<16x32xf32>
    %cst_234 = arith.constant 1.000000e-03 : f32
    %325 = vector.broadcast %cst_234 : f32 to vector<16x32xf32>
    %326 = arith.mulf %325, %324 : vector<16x32xf32>
    %327 = vector.broadcast %321 : vector<16x1xf32> to vector<16x32xf32>
    %328 = arith.mulf %326, %327 : vector<16x32xf32>
    %329 = arith.subf %312, %328 : vector<16x32xf32>
    %cst_235 = arith.constant 5.000000e-01 : f32
    %330 = vector.broadcast %cst_235 : f32 to vector<2x32xf32>
    %331 = arith.mulf %330, %309 : vector<2x32xf32>
    %c0_236 = arith.constant 0 : index
    %c0_237 = arith.constant 0 : index
    %332 = vector.load %arg12[%c0_236, %c0_237] : memref<2x32xf32, #tpu.memory_space<vmem>>, vector<2x32xf32>
    %c0_238 = arith.constant 0 : index
    %c0_239 = arith.constant 0 : index
    %333 = vector.load %arg12[%c0_238, %c0_239] : memref<2x32xf32, #tpu.memory_space<vmem>>, vector<2x32xf32>
    tpu.vector_store %arg12[%c0_238, %c0_239], %331 {strides = array<i32>} : memref<2x32xf32, #tpu.memory_space<vmem>>, vector<2x32xf32>,
    %cst_240 = arith.constant dense<0.000000e+00> : vector<16x2xf32>
    %334 = tpu.matmul %329, %332, %cst_240 {dimension_numbers = #tpu.dot_dimension_numbers<[1], [1], [0], [0], [0, 0, 1, 0], [], []>} : vector<16x32xf32>, vector<2x32xf32>, vector<16x2xf32> -> vector<16x2xf32>
    %c0_241 = arith.constant 0 : index
    %c0_242 = arith.constant 0 : index
    %335 = vector.load %arg13[%c0_241, %c0_242] : memref<16x2xf32, #tpu.memory_space<vmem>>, vector<16x2xf32>
    %c0_243 = arith.constant 0 : index
    %c0_244 = arith.constant 0 : index
    %336 = vector.load %arg13[%c0_243, %c0_244] : memref<16x2xf32, #tpu.memory_space<vmem>>, vector<16x2xf32>
    tpu.vector_store %arg13[%c0_243, %c0_244], %334 {strides = array<i32>} : memref<16x2xf32, #tpu.memory_space<vmem>>, vector<16x2xf32>,
    %c0_245 = arith.constant 0 : index
    %c0_246 = arith.constant 0 : index
    %337 = vector.load %arg14[%c0_245, %c0_246] : memref<16x2xf32, #tpu.memory_space<vmem>>, vector<16x2xf32>
    %cst_247 = arith.constant 5.000000e+01 : f32
    %338 = vector.broadcast %cst_247 : f32 to vector<16x2xf32>
    %339 = arith.mulf %338, %335 : vector<16x2xf32>
    %340 = arith.addf %337, %339 : vector<16x2xf32>
    %cst_248 = arith.constant 1.000000e+00 : f32
    %341 = vector.broadcast %cst_248 : f32 to vector<16x2xf32>
    %342 = arith.cmpf oge, %340, %341 : vector<16x2xf32>
    %cst_249 = arith.constant 0.000000e+00 : f32
    %343 = vector.broadcast %cst_249 : f32 to vector<16x2xf32>
    %344 = arith.select %342, %343, %340 : vector<16x2xi1>, vector<16x2xf32>
    %c0_250 = arith.constant 0 : index
    %c0_251 = arith.constant 0 : index
    %345 = vector.load %arg14[%c0_250, %c0_251] : memref<16x2xf32, #tpu.memory_space<vmem>>, vector<16x2xf32>
    tpu.vector_store %arg14[%c0_250, %c0_251], %344 {strides = array<i32>} : memref<16x2xf32, #tpu.memory_space<vmem>>, vector<16x2xf32>,
    %346 = arith.extui %342 : vector<16x2xi1> to vector<16x2xi32>
    %347 = arith.sitofp %346 : vector<16x2xi32> to vector<16x2xf32>
    %c5_252 = arith.constant 5 : index
    %c0_253 = arith.constant 0 : index
    %c0_254 = arith.constant 0 : index
    %348 = vector.load %arg8[%c5_252, %c0_253, %c0_254] : memref<8x16x2xf32, #tpu.memory_space<vmem>>, vector<1x16x2xf32>
    %349 = vector.shape_cast %348 : vector<1x16x2xf32> to vector<16x2xf32>
    %350 = vector.shape_cast %347 : vector<16x2xf32> to vector<1x16x2xf32>
    tpu.vector_store %arg8[%c5_252, %c0_253, %c0_254], %350 {strides = array<i32>} : memref<8x16x2xf32, #tpu.memory_space<vmem>>, vector<1x16x2xf32>,
    %cst_255 = arith.constant 1.000000e+01 : f32
    %351 = vector.broadcast %cst_255 : f32 to vector<16x2xf32>
    %352 = arith.divf %311, %351 : vector<16x2xf32>
    %353 = arith.subf %311, %352 : vector<16x2xf32>
    %354 = arith.addf %353, %347 : vector<16x2xf32>
    %c0_256 = arith.constant 0 : index
    %c0_257 = arith.constant 0 : index
    %355 = vector.load %arg10[%c0_256, %c0_257] : memref<16x2xf32, #tpu.memory_space<vmem>>, vector<16x2xf32>
    tpu.vector_store %arg10[%c0_256, %c0_257], %354 {strides = array<i32>} : memref<16x2xf32, #tpu.memory_space<vmem>>, vector<16x2xf32>,
    %cst_258 = arith.constant dense<0.000000e+00> : vector<32xf32>
    %356 = vector.multi_reduction <add>, %316, %cst_258 [0] : vector<2x32xf32> to vector<32xf32>
    %357 = vector.shape_cast %356 : vector<32xf32> to vector<1x32xf32>
    %cst_259 = arith.constant 5.000000e-01 : f32
    %358 = vector.broadcast %cst_259 : f32 to vector<1x32xf32>
    %359 = arith.mulf %357, %358 : vector<1x32xf32>
    %360 = math.absf %329 : vector<16x32xf32>
    %cst_260 = arith.constant 9.99999997E-7 : f32
    %361 = vector.broadcast %cst_260 : f32 to vector<16x32xf32>
    %362 = arith.addf %360, %361 : vector<16x32xf32>
    %cst_261 = arith.constant 1.000000e-03 : f32
    %363 = vector.broadcast %cst_261 : f32 to vector<16x32xf32>
    %364 = arith.mulf %363, %362 : vector<16x32xf32>
    %365 = vector.broadcast %359 : vector<1x32xf32> to vector<16x32xf32>
    %366 = arith.mulf %364, %365 : vector<16x32xf32>
    %367 = arith.addf %329, %366 : vector<16x32xf32>
    %c0_262 = arith.constant 0 : index
    %c0_263 = arith.constant 0 : index
    %368 = vector.load %arg11[%c0_262, %c0_263] : memref<16x32xf32, #tpu.memory_space<vmem>>, vector<16x32xf32>
    tpu.vector_store %arg11[%c0_262, %c0_263], %367 {strides = array<i32>} : memref<16x32xf32, #tpu.memory_space<vmem>>, vector<16x32xf32>,
    %c6 = arith.constant 6 : index
    %c0_264 = arith.constant 0 : index
    %c0_265 = arith.constant 0 : index
    %369 = vector.load %arg1[%c6, %c0_264, %c0_265] : memref<8x2x32xf32, #tpu.memory_space<vmem>>, vector<1x2x32xf32>
    %370 = vector.shape_cast %369 : vector<1x2x32xf32> to vector<2x32xf32>
    %c0_266 = arith.constant 0 : index
    %c0_267 = arith.constant 0 : index
    %371 = vector.load %arg9[%c0_266, %c0_267] : memref<2x32xf32, #tpu.memory_space<vmem>>, vector<2x32xf32>
    %c0_268 = arith.constant 0 : index
    %c0_269 = arith.constant 0 : index
    %372 = vector.load %arg10[%c0_268, %c0_269] : memref<16x2xf32, #tpu.memory_space<vmem>>, vector<16x2xf32>
    %c0_270 = arith.constant 0 : index
    %c0_271 = arith.constant 0 : index
    %373 = vector.load %arg11[%c0_270, %c0_271] : memref<16x32xf32, #tpu.memory_space<vmem>>, vector<16x32xf32>
    %cst_272 = arith.constant 1.000000e+01 : f32
    %374 = vector.broadcast %cst_272 : f32 to vector<2x32xf32>
    %375 = arith.divf %371, %374 : vector<2x32xf32>
    %376 = arith.subf %371, %375 : vector<2x32xf32>
    %377 = arith.addf %376, %370 : vector<2x32xf32>
    %c0_273 = arith.constant 0 : index
    %c0_274 = arith.constant 0 : index
    %378 = vector.load %arg9[%c0_273, %c0_274] : memref<2x32xf32, #tpu.memory_space<vmem>>, vector<2x32xf32>
    tpu.vector_store %arg9[%c0_273, %c0_274], %377 {strides = array<i32>} : memref<2x32xf32, #tpu.memory_space<vmem>>, vector<2x32xf32>,
    %cst_275 = arith.constant dense<0.000000e+00> : vector<16xf32>
    %379 = vector.multi_reduction <add>, %372, %cst_275 [1] : vector<16x2xf32> to vector<16xf32>
    %380 = vector.shape_cast %379 : vector<16xf32> to vector<16x1xf32>
    %cst_276 = arith.constant 5.000000e-01 : f32
    %381 = vector.broadcast %cst_276 : f32 to vector<16x1xf32>
    %382 = arith.mulf %380, %381 : vector<16x1xf32>
    %383 = math.absf %373 : vector<16x32xf32>
    %cst_277 = arith.constant 9.99999997E-7 : f32
    %384 = vector.broadcast %cst_277 : f32 to vector<16x32xf32>
    %385 = arith.addf %383, %384 : vector<16x32xf32>
    %cst_278 = arith.constant 1.000000e-03 : f32
    %386 = vector.broadcast %cst_278 : f32 to vector<16x32xf32>
    %387 = arith.mulf %386, %385 : vector<16x32xf32>
    %388 = vector.broadcast %382 : vector<16x1xf32> to vector<16x32xf32>
    %389 = arith.mulf %387, %388 : vector<16x32xf32>
    %390 = arith.subf %373, %389 : vector<16x32xf32>
    %cst_279 = arith.constant 5.000000e-01 : f32
    %391 = vector.broadcast %cst_279 : f32 to vector<2x32xf32>
    %392 = arith.mulf %391, %370 : vector<2x32xf32>
    %c0_280 = arith.constant 0 : index
    %c0_281 = arith.constant 0 : index
    %393 = vector.load %arg12[%c0_280, %c0_281] : memref<2x32xf32, #tpu.memory_space<vmem>>, vector<2x32xf32>
    %c0_282 = arith.constant 0 : index
    %c0_283 = arith.constant 0 : index
    %394 = vector.load %arg12[%c0_282, %c0_283] : memref<2x32xf32, #tpu.memory_space<vmem>>, vector<2x32xf32>
    tpu.vector_store %arg12[%c0_282, %c0_283], %392 {strides = array<i32>} : memref<2x32xf32, #tpu.memory_space<vmem>>, vector<2x32xf32>,
    %cst_284 = arith.constant dense<0.000000e+00> : vector<16x2xf32>
    %395 = tpu.matmul %390, %393, %cst_284 {dimension_numbers = #tpu.dot_dimension_numbers<[1], [1], [0], [0], [0, 0, 1, 0], [], []>} : vector<16x32xf32>, vector<2x32xf32>, vector<16x2xf32> -> vector<16x2xf32>
    %c0_285 = arith.constant 0 : index
    %c0_286 = arith.constant 0 : index
    %396 = vector.load %arg13[%c0_285, %c0_286] : memref<16x2xf32, #tpu.memory_space<vmem>>, vector<16x2xf32>
    %c0_287 = arith.constant 0 : index
    %c0_288 = arith.constant 0 : index
    %397 = vector.load %arg13[%c0_287, %c0_288] : memref<16x2xf32, #tpu.memory_space<vmem>>, vector<16x2xf32>
    tpu.vector_store %arg13[%c0_287, %c0_288], %395 {strides = array<i32>} : memref<16x2xf32, #tpu.memory_space<vmem>>, vector<16x2xf32>,
    %c0_289 = arith.constant 0 : index
    %c0_290 = arith.constant 0 : index
    %398 = vector.load %arg14[%c0_289, %c0_290] : memref<16x2xf32, #tpu.memory_space<vmem>>, vector<16x2xf32>
    %cst_291 = arith.constant 5.000000e+01 : f32
    %399 = vector.broadcast %cst_291 : f32 to vector<16x2xf32>
    %400 = arith.mulf %399, %396 : vector<16x2xf32>
    %401 = arith.addf %398, %400 : vector<16x2xf32>
    %cst_292 = arith.constant 1.000000e+00 : f32
    %402 = vector.broadcast %cst_292 : f32 to vector<16x2xf32>
    %403 = arith.cmpf oge, %401, %402 : vector<16x2xf32>
    %cst_293 = arith.constant 0.000000e+00 : f32
    %404 = vector.broadcast %cst_293 : f32 to vector<16x2xf32>
    %405 = arith.select %403, %404, %401 : vector<16x2xi1>, vector<16x2xf32>
    %c0_294 = arith.constant 0 : index
    %c0_295 = arith.constant 0 : index
    %406 = vector.load %arg14[%c0_294, %c0_295] : memref<16x2xf32, #tpu.memory_space<vmem>>, vector<16x2xf32>
    tpu.vector_store %arg14[%c0_294, %c0_295], %405 {strides = array<i32>} : memref<16x2xf32, #tpu.memory_space<vmem>>, vector<16x2xf32>,
    %407 = arith.extui %403 : vector<16x2xi1> to vector<16x2xi32>
    %408 = arith.sitofp %407 : vector<16x2xi32> to vector<16x2xf32>
    %c6_296 = arith.constant 6 : index
    %c0_297 = arith.constant 0 : index
    %c0_298 = arith.constant 0 : index
    %409 = vector.load %arg8[%c6_296, %c0_297, %c0_298] : memref<8x16x2xf32, #tpu.memory_space<vmem>>, vector<1x16x2xf32>
    %410 = vector.shape_cast %409 : vector<1x16x2xf32> to vector<16x2xf32>
    %411 = vector.shape_cast %408 : vector<16x2xf32> to vector<1x16x2xf32>
    tpu.vector_store %arg8[%c6_296, %c0_297, %c0_298], %411 {strides = array<i32>} : memref<8x16x2xf32, #tpu.memory_space<vmem>>, vector<1x16x2xf32>,
    %cst_299 = arith.constant 1.000000e+01 : f32
    %412 = vector.broadcast %cst_299 : f32 to vector<16x2xf32>
    %413 = arith.divf %372, %412 : vector<16x2xf32>
    %414 = arith.subf %372, %413 : vector<16x2xf32>
    %415 = arith.addf %414, %408 : vector<16x2xf32>
    %c0_300 = arith.constant 0 : index
    %c0_301 = arith.constant 0 : index
    %416 = vector.load %arg10[%c0_300, %c0_301] : memref<16x2xf32, #tpu.memory_space<vmem>>, vector<16x2xf32>
    tpu.vector_store %arg10[%c0_300, %c0_301], %415 {strides = array<i32>} : memref<16x2xf32, #tpu.memory_space<vmem>>, vector<16x2xf32>,
    %cst_302 = arith.constant dense<0.000000e+00> : vector<32xf32>
    %417 = vector.multi_reduction <add>, %377, %cst_302 [0] : vector<2x32xf32> to vector<32xf32>
    %418 = vector.shape_cast %417 : vector<32xf32> to vector<1x32xf32>
    %cst_303 = arith.constant 5.000000e-01 : f32
    %419 = vector.broadcast %cst_303 : f32 to vector<1x32xf32>
    %420 = arith.mulf %418, %419 : vector<1x32xf32>
    %421 = math.absf %390 : vector<16x32xf32>
    %cst_304 = arith.constant 9.99999997E-7 : f32
    %422 = vector.broadcast %cst_304 : f32 to vector<16x32xf32>
    %423 = arith.addf %421, %422 : vector<16x32xf32>
    %cst_305 = arith.constant 1.000000e-03 : f32
    %424 = vector.broadcast %cst_305 : f32 to vector<16x32xf32>
    %425 = arith.mulf %424, %423 : vector<16x32xf32>
    %426 = vector.broadcast %420 : vector<1x32xf32> to vector<16x32xf32>
    %427 = arith.mulf %425, %426 : vector<16x32xf32>
    %428 = arith.addf %390, %427 : vector<16x32xf32>
    %c0_306 = arith.constant 0 : index
    %c0_307 = arith.constant 0 : index
    %429 = vector.load %arg11[%c0_306, %c0_307] : memref<16x32xf32, #tpu.memory_space<vmem>>, vector<16x32xf32>
    tpu.vector_store %arg11[%c0_306, %c0_307], %428 {strides = array<i32>} : memref<16x32xf32, #tpu.memory_space<vmem>>, vector<16x32xf32>,
    %c7 = arith.constant 7 : index
    %c0_308 = arith.constant 0 : index
    %c0_309 = arith.constant 0 : index
    %430 = vector.load %arg1[%c7, %c0_308, %c0_309] : memref<8x2x32xf32, #tpu.memory_space<vmem>>, vector<1x2x32xf32>
    %431 = vector.shape_cast %430 : vector<1x2x32xf32> to vector<2x32xf32>
    %c0_310 = arith.constant 0 : index
    %c0_311 = arith.constant 0 : index
    %432 = vector.load %arg9[%c0_310, %c0_311] : memref<2x32xf32, #tpu.memory_space<vmem>>, vector<2x32xf32>
    %c0_312 = arith.constant 0 : index
    %c0_313 = arith.constant 0 : index
    %433 = vector.load %arg10[%c0_312, %c0_313] : memref<16x2xf32, #tpu.memory_space<vmem>>, vector<16x2xf32>
    %c0_314 = arith.constant 0 : index
    %c0_315 = arith.constant 0 : index
    %434 = vector.load %arg11[%c0_314, %c0_315] : memref<16x32xf32, #tpu.memory_space<vmem>>, vector<16x32xf32>
    %cst_316 = arith.constant 1.000000e+01 : f32
    %435 = vector.broadcast %cst_316 : f32 to vector<2x32xf32>
    %436 = arith.divf %432, %435 : vector<2x32xf32>
    %437 = arith.subf %432, %436 : vector<2x32xf32>
    %438 = arith.addf %437, %431 : vector<2x32xf32>
    %c0_317 = arith.constant 0 : index
    %c0_318 = arith.constant 0 : index
    %439 = vector.load %arg9[%c0_317, %c0_318] : memref<2x32xf32, #tpu.memory_space<vmem>>, vector<2x32xf32>
    tpu.vector_store %arg9[%c0_317, %c0_318], %438 {strides = array<i32>} : memref<2x32xf32, #tpu.memory_space<vmem>>, vector<2x32xf32>,
    %cst_319 = arith.constant dense<0.000000e+00> : vector<16xf32>
    %440 = vector.multi_reduction <add>, %433, %cst_319 [1] : vector<16x2xf32> to vector<16xf32>
    %441 = vector.shape_cast %440 : vector<16xf32> to vector<16x1xf32>
    %cst_320 = arith.constant 5.000000e-01 : f32
    %442 = vector.broadcast %cst_320 : f32 to vector<16x1xf32>
    %443 = arith.mulf %441, %442 : vector<16x1xf32>
    %444 = math.absf %434 : vector<16x32xf32>
    %cst_321 = arith.constant 9.99999997E-7 : f32
    %445 = vector.broadcast %cst_321 : f32 to vector<16x32xf32>
    %446 = arith.addf %444, %445 : vector<16x32xf32>
    %cst_322 = arith.constant 1.000000e-03 : f32
    %447 = vector.broadcast %cst_322 : f32 to vector<16x32xf32>
    %448 = arith.mulf %447, %446 : vector<16x32xf32>
    %449 = vector.broadcast %443 : vector<16x1xf32> to vector<16x32xf32>
    %450 = arith.mulf %448, %449 : vector<16x32xf32>
    %451 = arith.subf %434, %450 : vector<16x32xf32>
    %cst_323 = arith.constant 5.000000e-01 : f32
    %452 = vector.broadcast %cst_323 : f32 to vector<2x32xf32>
    %453 = arith.mulf %452, %431 : vector<2x32xf32>
    %c0_324 = arith.constant 0 : index
    %c0_325 = arith.constant 0 : index
    %454 = vector.load %arg12[%c0_324, %c0_325] : memref<2x32xf32, #tpu.memory_space<vmem>>, vector<2x32xf32>
    %c0_326 = arith.constant 0 : index
    %c0_327 = arith.constant 0 : index
    %455 = vector.load %arg12[%c0_326, %c0_327] : memref<2x32xf32, #tpu.memory_space<vmem>>, vector<2x32xf32>
    tpu.vector_store %arg12[%c0_326, %c0_327], %453 {strides = array<i32>} : memref<2x32xf32, #tpu.memory_space<vmem>>, vector<2x32xf32>,
    %cst_328 = arith.constant dense<0.000000e+00> : vector<16x2xf32>
    %456 = tpu.matmul %451, %454, %cst_328 {dimension_numbers = #tpu.dot_dimension_numbers<[1], [1], [0], [0], [0, 0, 1, 0], [], []>} : vector<16x32xf32>, vector<2x32xf32>, vector<16x2xf32> -> vector<16x2xf32>
    %c0_329 = arith.constant 0 : index
    %c0_330 = arith.constant 0 : index
    %457 = vector.load %arg13[%c0_329, %c0_330] : memref<16x2xf32, #tpu.memory_space<vmem>>, vector<16x2xf32>
    %c0_331 = arith.constant 0 : index
    %c0_332 = arith.constant 0 : index
    %458 = vector.load %arg13[%c0_331, %c0_332] : memref<16x2xf32, #tpu.memory_space<vmem>>, vector<16x2xf32>
    tpu.vector_store %arg13[%c0_331, %c0_332], %456 {strides = array<i32>} : memref<16x2xf32, #tpu.memory_space<vmem>>, vector<16x2xf32>,
    %c0_333 = arith.constant 0 : index
    %c0_334 = arith.constant 0 : index
    %459 = vector.load %arg14[%c0_333, %c0_334] : memref<16x2xf32, #tpu.memory_space<vmem>>, vector<16x2xf32>
    %cst_335 = arith.constant 5.000000e+01 : f32
    %460 = vector.broadcast %cst_335 : f32 to vector<16x2xf32>
    %461 = arith.mulf %460, %457 : vector<16x2xf32>
    %462 = arith.addf %459, %461 : vector<16x2xf32>
    %cst_336 = arith.constant 1.000000e+00 : f32
    %463 = vector.broadcast %cst_336 : f32 to vector<16x2xf32>
    %464 = arith.cmpf oge, %462, %463 : vector<16x2xf32>
    %cst_337 = arith.constant 0.000000e+00 : f32
    %465 = vector.broadcast %cst_337 : f32 to vector<16x2xf32>
    %466 = arith.select %464, %465, %462 : vector<16x2xi1>, vector<16x2xf32>
    %c0_338 = arith.constant 0 : index
    %c0_339 = arith.constant 0 : index
    %467 = vector.load %arg14[%c0_338, %c0_339] : memref<16x2xf32, #tpu.memory_space<vmem>>, vector<16x2xf32>
    tpu.vector_store %arg14[%c0_338, %c0_339], %466 {strides = array<i32>} : memref<16x2xf32, #tpu.memory_space<vmem>>, vector<16x2xf32>,
    %468 = arith.extui %464 : vector<16x2xi1> to vector<16x2xi32>
    %469 = arith.sitofp %468 : vector<16x2xi32> to vector<16x2xf32>
    %c7_340 = arith.constant 7 : index
    %c0_341 = arith.constant 0 : index
    %c0_342 = arith.constant 0 : index
    %470 = vector.load %arg8[%c7_340, %c0_341, %c0_342] : memref<8x16x2xf32, #tpu.memory_space<vmem>>, vector<1x16x2xf32>
    %471 = vector.shape_cast %470 : vector<1x16x2xf32> to vector<16x2xf32>
    %472 = vector.shape_cast %469 : vector<16x2xf32> to vector<1x16x2xf32>
    tpu.vector_store %arg8[%c7_340, %c0_341, %c0_342], %472 {strides = array<i32>} : memref<8x16x2xf32, #tpu.memory_space<vmem>>, vector<1x16x2xf32>,
    %cst_343 = arith.constant 1.000000e+01 : f32
    %473 = vector.broadcast %cst_343 : f32 to vector<16x2xf32>
    %474 = arith.divf %433, %473 : vector<16x2xf32>
    %475 = arith.subf %433, %474 : vector<16x2xf32>
    %476 = arith.addf %475, %469 : vector<16x2xf32>
    %c0_344 = arith.constant 0 : index
    %c0_345 = arith.constant 0 : index
    %477 = vector.load %arg10[%c0_344, %c0_345] : memref<16x2xf32, #tpu.memory_space<vmem>>, vector<16x2xf32>
    tpu.vector_store %arg10[%c0_344, %c0_345], %476 {strides = array<i32>} : memref<16x2xf32, #tpu.memory_space<vmem>>, vector<16x2xf32>,
    %cst_346 = arith.constant dense<0.000000e+00> : vector<32xf32>
    %478 = vector.multi_reduction <add>, %438, %cst_346 [0] : vector<2x32xf32> to vector<32xf32>
    %479 = vector.shape_cast %478 : vector<32xf32> to vector<1x32xf32>
    %cst_347 = arith.constant 5.000000e-01 : f32
    %480 = vector.broadcast %cst_347 : f32 to vector<1x32xf32>
    %481 = arith.mulf %479, %480 : vector<1x32xf32>
    %482 = math.absf %451 : vector<16x32xf32>
    %cst_348 = arith.constant 9.99999997E-7 : f32
    %483 = vector.broadcast %cst_348 : f32 to vector<16x32xf32>
    %484 = arith.addf %482, %483 : vector<16x32xf32>
    %cst_349 = arith.constant 1.000000e-03 : f32
    %485 = vector.broadcast %cst_349 : f32 to vector<16x32xf32>
    %486 = arith.mulf %485, %484 : vector<16x32xf32>
    %487 = vector.broadcast %481 : vector<1x32xf32> to vector<16x32xf32>
    %488 = arith.mulf %486, %487 : vector<16x32xf32>
    %489 = arith.addf %451, %488 : vector<16x32xf32>
    %c0_350 = arith.constant 0 : index
    %c0_351 = arith.constant 0 : index
    %490 = vector.load %arg11[%c0_350, %c0_351] : memref<16x32xf32, #tpu.memory_space<vmem>>, vector<16x32xf32>
    tpu.vector_store %arg11[%c0_350, %c0_351], %489 {strides = array<i32>} : memref<16x32xf32, #tpu.memory_space<vmem>>, vector<16x32xf32>,
    return
  }
  func.func @transform_0(%arg0: i32) -> (i32, i32, i32) {
    %c0_i32 = arith.constant 0 : i32
    %c0_i32_0 = arith.constant 0 : i32
    %c0_i32_1 = arith.constant 0 : i32
    return %arg0, %c0_i32, %c0_i32_0 : i32, i32, i32
  }
  func.func @transform_1(%arg0: i32) -> (i32, i32) {
    %c0_i32 = arith.constant 0 : i32
    %c0_i32_0 = arith.constant 0 : i32
    %c0_i32_1 = arith.constant 0 : i32
    return %c0_i32, %c0_i32_0 : i32, i32
  }
  func.func @transform_2(%arg0: i32) -> (i32, i32) {
    %c0_i32 = arith.constant 0 : i32
    %c0_i32_0 = arith.constant 0 : i32
    %c0_i32_1 = arith.constant 0 : i32
    return %c0_i32, %c0_i32_0 : i32, i32
  }
  func.func @transform_3(%arg0: i32) -> (i32, i32) {
    %c0_i32 = arith.constant 0 : i32
    %c0_i32_0 = arith.constant 0 : i32
    %c0_i32_1 = arith.constant 0 : i32
    return %c0_i32, %c0_i32_0 : i32, i32
  }
  func.func @transform_4(%arg0: i32) -> (i32, i32) {
    %c0_i32 = arith.constant 0 : i32
    %c0_i32_0 = arith.constant 0 : i32
    %c0_i32_1 = arith.constant 0 : i32
    return %c0_i32, %c0_i32_0 : i32, i32
  }
  func.func @transform_5(%arg0: i32) -> (i32, i32) {
    %c0_i32 = arith.constant 0 : i32
    %c0_i32_0 = arith.constant 0 : i32
    %c0_i32_1 = arith.constant 0 : i32
    return %c0_i32, %c0_i32_0 : i32, i32
  }
  func.func @transform_6(%arg0: i32) -> (i32, i32) {
    %c0_i32 = arith.constant 0 : i32
    %c0_i32_0 = arith.constant 0 : i32
    %c0_i32_1 = arith.constant 0 : i32
    return %c0_i32, %c0_i32_0 : i32, i32
  }
  func.func @transform_7(%arg0: i32) -> (i32, i32, i32) {
    %c0_i32 = arith.constant 0 : i32
    %c0_i32_0 = arith.constant 0 : i32
    %c0_i32_1 = arith.constant 0 : i32
    return %arg0, %c0_i32, %c0_i32_0 : i32, i32, i32
  }
  func.func @transform_8(%arg0: i32) -> (i32, i32) {
    %c0_i32 = arith.constant 0 : i32
    %c0_i32_0 = arith.constant 0 : i32
    %c0_i32_1 = arith.constant 0 : i32
    return %c0_i32, %c0_i32_0 : i32, i32
  }
  func.func @transform_9(%arg0: i32) -> (i32, i32) {
    %c0_i32 = arith.constant 0 : i32
    %c0_i32_0 = arith.constant 0 : i32
    %c0_i32_1 = arith.constant 0 : i32
    return %c0_i32, %c0_i32_0 : i32, i32
  }
  func.func @transform_10(%arg0: i32) -> (i32, i32) {
    %c0_i32 = arith.constant 0 : i32
    %c0_i32_0 = arith.constant 0 : i32
    %c0_i32_1 = arith.constant 0 : i32
    return %c0_i32, %c0_i32_0 : i32, i32
  }
  func.func @transform_11(%arg0: i32) -> (i32, i32) {
    %c0_i32 = arith.constant 0 : i32
    %c0_i32_0 = arith.constant 0 : i32
    %c0_i32_1 = arith.constant 0 : i32
    return %c0_i32, %c0_i32_0 : i32, i32
  }
  func.func @transform_12(%arg0: i32) -> (i32, i32) {
    %c0_i32 = arith.constant 0 : i32
    %c0_i32_0 = arith.constant 0 : i32
    %c0_i32_1 = arith.constant 0 : i32
    return %c0_i32, %c0_i32_0 : i32, i32
  }
  func.func @transform_13(%arg0: i32) -> (i32, i32) {
    %c0_i32 = arith.constant 0 : i32
    %c0_i32_0 = arith.constant 0 : i32
    %c0_i32_1 = arith.constant 0 : i32
    return %c0_i32, %c0_i32_0 : i32, i32
  }
}

</mosaic_0001>

<llo_original>
// kernel: stdp_run.1
$region0: #{stdp_run.1}
  #allocation0 [shape = 'u32[]', space=smem, size = 0x4, offset = 0x4, fixed_abs, tag = 'smem constant byte address 0x4 - core index']
  #allocation1 [shape = 'u32[72,128]{1,0:T(1,128)}', space=vmem, size = 0x9000, scoped, tag = 'internal scratch']
  %s0 = inlined_call_operand.vmem [shape: f32[64,2,32], index: 0, kind: input, shape index: {}]
  %s1 = inlined_call_operand.vmem [shape: f32[2,32], index: 1, kind: input, shape index: {}]
  %s2 = inlined_call_operand.vmem [shape: f32[16,2], index: 2, kind: input, shape index: {}]
  %s3 = inlined_call_operand.vmem [shape: f32[16,32], index: 3, kind: input, shape index: {}]
  %s4 = inlined_call_operand.vmem [shape: f32[2,32], index: 4, kind: input, shape index: {}]
  %s5 = inlined_call_operand.vmem [shape: f32[16,2], index: 5, kind: input, shape index: {}]
  %s6 = inlined_call_operand.vmem [shape: f32[16,2], index: 6, kind: input, shape index: {}]
  %s7 = inlined_call_operand.vmem [shape: f32[64,16,2], index: 7, kind: output, shape index: {0}]
  %s8 = inlined_call_operand.hbm [shape: f32[2,32], index: 8, kind: output, shape index: {1}]
  %s9 = inlined_call_operand.vmem [shape: f32[16,2], index: 9, kind: output, shape index: {2}]
  %s10 = inlined_call_operand.hbm [shape: f32[16,32], index: 10, kind: output, shape index: {3}]
  %s11 = inlined_call_operand.hbm [shape: f32[2,32], index: 11, kind: output, shape index: {4}]
  %s12 = inlined_call_operand.vmem [shape: f32[16,2], index: 12, kind: output, shape index: {5}]
  %s13 = inlined_call_operand.vmem [shape: f32[16,2], index: 13, kind: output, shape index: {6}]
  %14 = xla_tuple %s7, %s8, %s9, %s10, %s11, %s12, %s13
  %s15 = sld [smem:[#allocation0]]
  $region113: #{stdp_run.1} parent=0
    _
  %s17 = ssub.s32 1, %s15
  %s18 = scalar_select 0, %s17, %s15
  $region1: #{stdp_run.1} parent=0
    #allocation2 [shape = 'u8[1024]{0}', space=vmem, size = 0x400, scoped, tag = 'output window, operand 1, single buffered']
    #allocation3 [shape = 's32[2]{0}', space=sflag, size = 0x8, scoped, tag = 'scoped memory for stdp_run.1']
    #allocation4 [shape = 'u8[8192]{0}', space=vmem, size = 0x2000, scoped, tag = 'output window, operand 3, single buffered']
    #allocation5 [shape = 's32[1]{0}', space=sflag, size = 0x4, scoped, tag = 'scoped memory for stdp_run.1']
    #allocation6 [shape = 'u8[1024]{0}', space=vmem, size = 0x400, scoped, tag = 'output window, operand 4, single buffered']
    %19 = vsyncpa [#allocation3], 0
    %20 = vsyncpa [#allocation5], 0
    loop: start=0, step=1, limit=10
    $region2: #{stdp_run.1} parent=1 // loop_pre_header
      _
    $region3: #{stdp_run.1} parent=1 // loop_header
      %s22 = sphi 0, %s26
      %p23 = scmp.ge.s32.totalorder %s22, 10
      %s32 = sphi 0, %s34
      %s35 = sphi 0, %s32
      %s36 = sphi 0, %s35
      %s52 = sphi 0, %s36
      %s56 = sphi 0, %s56
      %s58 = sphi 0, %s56
      %s59 = sphi 0, %s58
      %s73 = sphi 0, %s59
      %s77 = sphi 0, %s77
      %s79 = sphi 0, %s77
      %s80 = sphi 0, %s79
      %s94 = sphi 0, %s80
      %s98 = sphi 0, %s98
      %s100 = sphi 0, %s98
      %s101 = sphi 0, %s100
      %s115 = sphi 0, %s101
      %s119 = sphi 0, %s119
      %s121 = sphi 0, %s119
      %s122 = sphi 0, %s121
      %s136 = sphi 0, %s122
      %s140 = sphi 0, %s140
      %s142 = sphi 0, %s140
      %s143 = sphi 0, %s142
      %s157 = sphi 0, %s143
      %s161 = sphi 0, %s161
      %s163 = sphi 0, %s161
      %s164 = sphi 0, %s163
      %s178 = sphi 0, %s164
      %s184 = sphi 0, %s186
      %s187 = sphi 0, %s184
      %s188 = sphi 0, %s187
      %s204 = sphi 0, %s188
      %s208 = sphi 0, %s208
      %s210 = sphi 0, %s208
      %s211 = sphi 0, %s210
      %s225 = sphi 0, %s211
      %s229 = sphi 0, %s229
      %s231 = sphi 0, %s229
      %s232 = sphi 0, %s231
      %s246 = sphi 0, %s232
      %s250 = sphi 0, %s250
      %s252 = sphi 0, %s250
      %s253 = sphi 0, %s252
      %s267 = sphi 0, %s253
      %s271 = sphi 0, %s271
      %s273 = sphi 0, %s271
      %s274 = sphi 0, %s273
      %s288 = sphi 0, %s274
      %s292 = sphi 0, %s292
      %s294 = sphi 0, %s292
      %s295 = sphi 0, %s294
      %s309 = sphi 0, %s295
      %s313 = sphi 0, %s313
      %s315 = sphi 0, %s313
      %s316 = sphi 0, %s315
      %s330 = sphi 0, %s316
    $region4: #{stdp_run.1} parent=1 // loop_header_branch
      %25 = sbr.rel (%p23) target = $region8
    $region5: #{stdp_run.1} parent=1 // loop_body
      %s27 = ssub.s32 %s22, 1
      %s28 = ssub.s32 %s22, 2
      %s29 = sadd.s32 %s22, 1
      %s30 = ssub.s32 %s22, %s29
      %p31 = scmp.eq.s32.totalorder %s30, 0
      %s33 = sadd.s32 %s32, 1
      %s34 = scalar_select %p31, %s32, %s33
      %p37 = pneg %p31
      %p38 = scmp.eq.s32.totalorder %s22, 7
      %p39 = por %p37, %p38
      %p40 = scmp.ne.s32.totalorder %s32, %s35
      %p41 = scmp.eq.s32.totalorder %s22, 0
      %p42 = por %p40, %p41
      %p43 = scmp.ne.s32.totalorder %s32, %s35
      %p44 = scmp.eq.s32.totalorder %s27, 7
      %p45 = por %p43, %p44
      %p46 = scmp.ne.s32.totalorder %s35, %s36
      %p47 = scmp.eq.s32.totalorder %s27, 0
      %p48 = por %p46, %p47
      %p49 = scmp.ne.s32.totalorder %s35, %s36
      %p50 = scmp.eq.s32.totalorder %s28, 7
      %p51 = por %p49, %p50
      %p53 = scmp.ne.s32.totalorder %s36, %s52
      %p54 = scmp.eq.s32.totalorder %s28, 0
      %p55 = por %p53, %p54
      %s57 = sadd.s32 %s56, 1
      %p60 = scmp.eq.s32.totalorder %s22, 7
      %p61 = scmp.ne.s32.totalorder %s56, %s58
      %p62 = scmp.eq.s32.totalorder %s22, 0
      %p63 = por %p61, %p62
      %p64 = scmp.ne.s32.totalorder %s56, %s58
      %p65 = scmp.eq.s32.totalorder %s27, 7
      %p66 = por %p64, %p65
      %p67 = scmp.ne.s32.totalorder %s58, %s59
      %p68 = scmp.eq.s32.totalorder %s27, 0
      %p69 = por %p67, %p68
      %p70 = scmp.ne.s32.totalorder %s58, %s59
      %p71 = scmp.eq.s32.totalorder %s28, 7
      %p72 = por %p70, %p71
      %p74 = scmp.ne.s32.totalorder %s59, %s73
      %p75 = scmp.eq.s32.totalorder %s28, 0
      %p76 = por %p74, %p75
      %s78 = sadd.s32 %s77, 1
      %p81 = scmp.eq.s32.totalorder %s22, 7
      %p82 = scmp.ne.s32.totalorder %s77, %s79
      %p83 = scmp.eq.s32.totalorder %s22, 0
      %p84 = por %p82, %p83
      %p85 = scmp.ne.s32.totalorder %s77, %s79
      %p86 = scmp.eq.s32.totalorder %s27, 7
      %p87 = por %p85, %p86
      %p88 = scmp.ne.s32.totalorder %s79, %s80
      %p89 = scmp.eq.s32.totalorder %s27, 0
      %p90 = por %p88, %p89
      %p91 = scmp.ne.s32.totalorder %s79, %s80
      %p92 = scmp.eq.s32.totalorder %s28, 7
      %p93 = por %p91, %p92
      %p95 = scmp.ne.s32.totalorder %s80, %s94
      %p96 = scmp.eq.s32.totalorder %s28, 0
      %p97 = por %p95, %p96
      %s99 = sadd.s32 %s98, 1
      %p102 = scmp.eq.s32.totalorder %s22, 7
      %p103 = scmp.ne.s32.totalorder %s98, %s100
      %p104 = scmp.eq.s32.totalorder %s22, 0
      %p105 = por %p103, %p104
      %p106 = scmp.ne.s32.totalorder %s98, %s100
      %p107 = scmp.eq.s32.totalorder %s27, 7
      %p108 = por %p106, %p107
      %p109 = scmp.ne.s32.totalorder %s100, %s101
      %p110 = scmp.eq.s32.totalorder %s27, 0
      %p111 = por %p109, %p110
      %p112 = scmp.ne.s32.totalorder %s100, %s101
      %p113 = scmp.eq.s32.totalorder %s28, 7
      %p114 = por %p112, %p113
      %p116 = scmp.ne.s32.totalorder %s101, %s115
      %p117 = scmp.eq.s32.totalorder %s28, 0
      %p118 = por %p116, %p117
      %s120 = sadd.s32 %s119, 1
      %p123 = scmp.eq.s32.totalorder %s22, 7
      %p124 = scmp.ne.s32.totalorder %s119, %s121
      %p125 = scmp.eq.s32.totalorder %s22, 0
      %p126 = por %p124, %p125
      %p127 = scmp.ne.s32.totalorder %s119, %s121
      %p128 = scmp.eq.s32.totalorder %s27, 7
      %p129 = por %p127, %p128
      %p130 = scmp.ne.s32.totalorder %s121, %s122
      %p131 = scmp.eq.s32.totalorder %s27, 0
      %p132 = por %p130, %p131
      %p133 = scmp.ne.s32.totalorder %s121, %s122
      %p134 = scmp.eq.s32.totalorder %s28, 7
      %p135 = por %p133, %p134
      %p137 = scmp.ne.s32.totalorder %s122, %s136
      %p138 = scmp.eq.s32.totalorder %s28, 0
      %p139 = por %p137, %p138
      %s141 = sadd.s32 %s140, 1
      %p144 = scmp.eq.s32.totalorder %s22, 7
      %p145 = scmp.ne.s32.totalorder %s140, %s142
      %p146 = scmp.eq.s32.totalorder %s22, 0
      %p147 = por %p145, %p146
      %p148 = scmp.ne.s32.totalorder %s140, %s142
      %p149 = scmp.eq.s32.totalorder %s27, 7
      %p150 = por %p148, %p149
      %p151 = scmp.ne.s32.totalorder %s142, %s143
      %p152 = scmp.eq.s32.totalorder %s27, 0
      %p153 = por %p151, %p152
      %p154 = scmp.ne.s32.totalorder %s142, %s143
      %p155 = scmp.eq.s32.totalorder %s28, 7
      %p156 = por %p154, %p155
      %p158 = scmp.ne.s32.totalorder %s143, %s157
      %p159 = scmp.eq.s32.totalorder %s28, 0
      %p160 = por %p158, %p159
      %s162 = sadd.s32 %s161, 1
      %p165 = scmp.eq.s32.totalorder %s22, 7
      %p166 = scmp.ne.s32.totalorder %s161, %s163
      %p167 = scmp.eq.s32.totalorder %s22, 0
      %p168 = por %p166, %p167
      %p169 = scmp.ne.s32.totalorder %s161, %s163
      %p170 = scmp.eq.s32.totalorder %s27, 7
      %p171 = por %p169, %p170
      %p172 = scmp.ne.s32.totalorder %s163, %s164
      %p173 = scmp.eq.s32.totalorder %s27, 0
      %p174 = por %p172, %p173
      %p175 = scmp.ne.s32.totalorder %s163, %s164
      %p176 = scmp.eq.s32.totalorder %s28, 7
      %p177 = por %p175, %p176
      %p179 = scmp.ne.s32.totalorder %s164, %s178
      %p180 = scmp.eq.s32.totalorder %s28, 0
      %p181 = por %p179, %p180
      %s182 = ssub.s32 %s22, %s29
      %p183 = scmp.eq.s32.totalorder %s182, 0
      %s185 = sadd.s32 %s184, 1
      %s186 = scalar_select %p183, %s184, %s185
      %p189 = pneg %p183
      %p190 = scmp.eq.s32.totalorder %s22, 7
      %p191 = por %p189, %p190
      %p192 = scmp.ne.s32.totalorder %s184, %s187
      %p193 = scmp.eq.s32.totalorder %s22, 0
      %p194 = por %p192, %p193
      %p195 = scmp.ne.s32.totalorder %s184, %s187
      %p196 = scmp.eq.s32.totalorder %s27, 7
      %p197 = por %p195, %p196
      %p198 = scmp.ne.s32.totalorder %s187, %s188
      %p199 = scmp.eq.s32.totalorder %s27, 0
      %p200 = por %p198, %p199
      %p201 = scmp.ne.s32.totalorder %s187, %s188
      %p202 = scmp.eq.s32.totalorder %s28, 7
      %p203 = por %p201, %p202
      %p205 = scmp.ne.s32.totalorder %s188, %s204
      %p206 = scmp.eq.s32.totalorder %s28, 0
      %p207 = por %p205, %p206
      %s209 = sadd.s32 %s208, 1
      %p212 = scmp.eq.s32.totalorder %s22, 7
      %p213 = scmp.ne.s32.totalorder %s208, %s210
      %p214 = scmp.eq.s32.totalorder %s22, 0
      %p215 = por %p213, %p214
      %p216 = scmp.ne.s32.totalorder %s208, %s210
      %p217 = scmp.eq.s32.totalorder %s27, 7
      %p218 = por %p216, %p217
      %p219 = scmp.ne.s32.totalorder %s210, %s211
      %p220 = scmp.eq.s32.totalorder %s27, 0
      %p221 = por %p219, %p220
      %p222 = scmp.ne.s32.totalorder %s210, %s211
      %p223 = scmp.eq.s32.totalorder %s28, 7
      %p224 = por %p222, %p223
      %p226 = scmp.ne.s32.totalorder %s211, %s225
      %p227 = scmp.eq.s32.totalorder %s28, 0
      %p228 = por %p226, %p227
      %s230 = sadd.s32 %s229, 1
      %p233 = scmp.eq.s32.totalorder %s22, 7
      %p234 = scmp.ne.s32.totalorder %s229, %s231
      %p235 = scmp.eq.s32.totalorder %s22, 0
      %p236 = por %p234, %p235
      %p237 = scmp.ne.s32.totalorder %s229, %s231
      %p238 = scmp.eq.s32.totalorder %s27, 7
      %p239 = por %p237, %p238
      %p240 = scmp.ne.s32.totalorder %s231, %s232
      %p241 = scmp.eq.s32.totalorder %s27, 0
      %p242 = por %p240, %p241
      %p243 = scmp.ne.s32.totalorder %s231, %s232
      %p244 = scmp.eq.s32.totalorder %s28, 7
      %p245 = por %p243, %p244
      %p247 = scmp.ne.s32.totalorder %s232, %s246
      %p248 = scmp.eq.s32.totalorder %s28, 0
      %p249 = por %p247, %p248
      %s251 = sadd.s32 %s250, 1
      %p254 = scmp.eq.s32.totalorder %s22, 7
      %p255 = scmp.ne.s32.totalorder %s250, %s252
      %p256 = scmp.eq.s32.totalorder %s22, 0
      %p257 = por %p255, %p256
      %p258 = scmp.ne.s32.totalorder %s250, %s252
      %p259 = scmp.eq.s32.totalorder %s27, 7
      %p260 = por %p258, %p259
      %p261 = scmp.ne.s32.totalorder %s252, %s253
      %p262 = scmp.eq.s32.totalorder %s27, 0
      %p263 = por %p261, %p262
      %p264 = scmp.ne.s32.totalorder %s252, %s253
      %p265 = scmp.eq.s32.totalorder %s28, 7
      %p266 = por %p264, %p265
      %p268 = scmp.ne.s32.totalorder %s253, %s267
      %p269 = scmp.eq.s32.totalorder %s28, 0
      %p270 = por %p268, %p269
      %s272 = sadd.s32 %s271, 1
      %p275 = scmp.eq.s32.totalorder %s22, 7
      %p276 = scmp.ne.s32.totalorder %s271, %s273
      %p277 = scmp.eq.s32.totalorder %s22, 0
      %p278 = por %p276, %p277
      %p279 = scmp.ne.s32.totalorder %s271, %s273
      %p280 = scmp.eq.s32.totalorder %s27, 7
      %p281 = por %p279, %p280
      %p282 = scmp.ne.s32.totalorder %s273, %s274
      %p283 = scmp.eq.s32.totalorder %s27, 0
      %p284 = por %p282, %p283
      %p285 = scmp.ne.s32.totalorder %s273, %s274
      %p286 = scmp.eq.s32.totalorder %s28, 7
      %p287 = por %p285, %p286
      %p289 = scmp.ne.s32.totalorder %s274, %s288
      %p290 = scmp.eq.s32.totalorder %s28, 0
      %p291 = por %p289, %p290
      %s293 = sadd.s32 %s292, 1
      %p296 = scmp.eq.s32.totalorder %s22, 7
      %p297 = scmp.ne.s32.totalorder %s292, %s294
      %p298 = scmp.eq.s32.totalorder %s22, 0
      %p299 = por %p297, %p298
      %p300 = scmp.ne.s32.totalorder %s292, %s294
      %p301 = scmp.eq.s32.totalorder %s27, 7
      %p302 = por %p300, %p301
      %p303 = scmp.ne.s32.totalorder %s294, %s295
      %p304 = scmp.eq.s32.totalorder %s27, 0
      %p305 = por %p303, %p304
      %p306 = scmp.ne.s32.totalorder %s294, %s295
      %p307 = scmp.eq.s32.totalorder %s28, 7
      %p308 = por %p306, %p307
      %p310 = scmp.ne.s32.totalorder %s295, %s309
      %p311 = scmp.eq.s32.totalorder %s28, 0
      %p312 = por %p310, %p311
      %s314 = sadd.s32 %s313, 1
      %p317 = scmp.eq.s32.totalorder %s22, 7
      %p318 = scmp.ne.s32.totalorder %s313, %s315
      %p319 = scmp.eq.s32.totalorder %s22, 0
      %p320 = por %p318, %p319
      %p321 = scmp.ne.s32.totalorder %s313, %s315
      %p322 = scmp.eq.s32.totalorder %s27, 7
      %p323 = por %p321, %p322
      %p324 = scmp.ne.s32.totalorder %s315, %s316
      %p325 = scmp.eq.s32.totalorder %s27, 0
      %p326 = por %p324, %p325
      %p327 = scmp.ne.s32.totalorder %s315, %s316
      %p328 = scmp.eq.s32.totalorder %s28, 7
      %p329 = por %p327, %p328
      %p331 = scmp.ne.s32.totalorder %s316, %s330
      %p332 = scmp.eq.s32.totalorder %s28, 0
      %p333 = por %p331, %p332
      %p334 = scmp.le.s32.totalorder 1, %s22
      %p335 = scmp.lt.s32.totalorder %s22, 9
      %p336 = pnand %p334, %p335
      %p337 = pneg %p336
      // Predicated region
      $region9: #{stdp_run.1} parent=5 // pred_check
        _
      $region10: #{stdp_run.1} parent=5 // pred_check_branch
        %339 = sbr.rel (%p336) target = $region12
      $region11: #{stdp_run.1} parent=5 // pred_region
        %s340 = ssub.s32 %s22, 1
        // Predicated region
        $region13: #{stdp_run.1} parent=11 // pred_check
          %p341 = pneg %p69
        $region14: #{stdp_run.1} parent=11 // pred_check_branch
          %343 = sbr.rel (%p341) target = $region16
        $region15: #{stdp_run.1} parent=11 // pred_region
          _
        $region16: #{stdp_run.1} parent=11 // pred_fallthru
          _
        // Predicated region
        $region17: #{stdp_run.1} parent=11 // pred_check
          %p344 = pneg %p90
        $region18: #{stdp_run.1} parent=11 // pred_check_branch
          %346 = sbr.rel (%p344) target = $region20
        $region19: #{stdp_run.1} parent=11 // pred_region
          _
        $region20: #{stdp_run.1} parent=11 // pred_fallthru
          _
        // Predicated region
        $region21: #{stdp_run.1} parent=11 // pred_check
          %p347 = pneg %p111
        $region22: #{stdp_run.1} parent=11 // pred_check_branch
          %349 = sbr.rel (%p347) target = $region24
        $region23: #{stdp_run.1} parent=11 // pred_region
          _
        $region24: #{stdp_run.1} parent=11 // pred_fallthru
          _
        // Predicated region
        $region25: #{stdp_run.1} parent=11 // pred_check
          %p350 = pneg %p132
        $region26: #{stdp_run.1} parent=11 // pred_check_branch
          %352 = sbr.rel (%p350) target = $region28
        $region27: #{stdp_run.1} parent=11 // pred_region
          _
        $region28: #{stdp_run.1} parent=11 // pred_fallthru
          _
        // Predicated region
        $region29: #{stdp_run.1} parent=11 // pred_check
          %p353 = pneg %p153
        $region30: #{stdp_run.1} parent=11 // pred_check_branch
          %355 = sbr.rel (%p353) target = $region32
        $region31: #{stdp_run.1} parent=11 // pred_region
          _
        $region32: #{stdp_run.1} parent=11 // pred_fallthru
          _
        // Predicated region
        $region33: #{stdp_run.1} parent=11 // pred_check
          %p356 = pneg %p174
        $region34: #{stdp_run.1} parent=11 // pred_check_branch
          %358 = sbr.rel (%p356) target = $region36
        $region35: #{stdp_run.1} parent=11 // pred_region
          _
        $region36: #{stdp_run.1} parent=11 // pred_fallthru
          _
      $region12: #{stdp_run.1} parent=5 // pred_fallthru
        _
      %p359 = scmp.lt.s32.totalorder %s22, 8
      // Predicated region
      $region37: #{stdp_run.1} parent=5 // pred_check
        %p360 = pneg %p359
      $region38: #{stdp_run.1} parent=5 // pred_check_branch
        %362 = sbr.rel (%p360) target = $region40
      $region39: #{stdp_run.1} parent=5 // pred_region
        // Predicated region
        $region41: #{stdp_run.1} parent=39 // pred_check
          %p363 = pneg %p42
        $region42: #{stdp_run.1} parent=39 // pred_check_branch
          %365 = sbr.rel (%p363) target = $region44
        $region43: #{stdp_run.1} parent=39 // pred_region
          %s366 = smul.u32 8, %s22
          %p367 = scmp.lt.s32.totalorder %s366, 63
          %s368 = scalar_select %p367, %s366, 63
          %s369 = smul.addr %s368, 2
          %s370 = scalar_lea.vmem %s0, %s369
          %s371 = smul.u32 8, %s22
        $region44: #{stdp_run.1} parent=39 // pred_fallthru
          _
      $region40: #{stdp_run.1} parent=5 // pred_fallthru
        _
      %p372 = scmp.le.s32.totalorder 1, %s22
      %p373 = scmp.lt.s32.totalorder %s22, 9
      %p374 = pnand %p372, %p373
      %p375 = pneg %p374
      // Predicated region
      $region45: #{stdp_run.1} parent=5 // pred_check
        _
      $region46: #{stdp_run.1} parent=5 // pred_check_branch
        %377 = sbr.rel (%p374) target = $region48
      $region47: #{stdp_run.1} parent=5 // pred_region
        %s378 = ssub.s32 %s22, 1
        %s379 = smul.u32 8, %s27
        %p380 = scmp.lt.s32.totalorder %s379, 63
        %s381 = scalar_select %p380, %s379, 63
        %s382 = smul.addr %s381, 2
        %s383 = scalar_lea.vmem %s0, %s382
        %p384 = pneg %p48
        %p385 = pneg %p45
        %p386 = pneg %p69
        %p387 = pneg %p66
        %p388 = pneg %p90
        %p389 = pneg %p87
        %p390 = pneg %p111
        %p391 = pneg %p108
        %p392 = pneg %p132
        %p393 = pneg %p129
        %p394 = pneg %p153
        %p395 = pneg %p150
        %p396 = pneg %p174
        %p397 = pneg %p171
        %p398 = pneg %p200
        %p399 = pneg %p197
        %s400 = smul.u32 8, %s27
        %p401 = scmp.lt.s32.totalorder %s400, 63
        %s402 = scalar_select %p401, %s400, 63
        %s403 = smul.addr %s402, 2
        %s404 = smul.addr %s403, 8
        %s405 = scalar_lea.vmem %s7, %s404
        %p406 = pneg %p221
        %p407 = pneg %p218
        %p408 = pneg %p242
        %p409 = pneg %p239
        %p410 = pneg %p263
        %p411 = pneg %p260
        %p412 = pneg %p284
        %p413 = pneg %p281
        %p414 = pneg %p305
        %p415 = pneg %p302
        %p416 = pneg %p326
        %p417 = pneg %p323
        %s418 = smul.u32 8, %s27
        %p419 = scmp.lt.s32.totalorder %s418, 63
        %s420 = scalar_select %p419, %s418, 63
        %s421 = smul.addr %s420, 2
        %s422 = scalar_lea.vmem %s0, %s421
        %s423 = smul.u32 8, %s27
        %s424 = smul.u32 8, %s27
        %p425 = scmp.lt.s32.totalorder %s424, 63
        %s426 = scalar_select %p425, %s424, 63
        %s427 = smul.addr %s426, 2
        %s428 = smul.addr %s427, 8
        %s429 = scalar_lea.vmem %s7, %s428
        %s430 = smul.u32 8, %s27
        %p431 = scmp.eq.s32.totalorder %s27, 0
        // Predicated region
        $region49: #{stdp_run.1} parent=47 // pred_check
          %p432 = pneg %p431
        $region50: #{stdp_run.1} parent=47 // pred_check_branch
          %434 = sbr.rel (%p432) target = $region52
        $region51: #{stdp_run.1} parent=47 // pred_region
          %v435 = vld [vmem:[%s1] sm:$0x3]
          %vm436 = vcmask 254976
          %437 = vst.msk [vmem:[#allocation2] sm:$0x3] %vm436, %v435
          %v438 = vld [vmem:[%s2] sm:$0xff]
          %v439 = vld [vmem:[%s2 + $0x8] sm:$0xff]
          %vm440 = vcmask 15360
          %441 = vst.msk [vmem:[%s9] sm:$0xff] %vm440, %v438
          %442 = vst.msk [vmem:[%s9 + $0x8] sm:$0xff] %vm440, %v439
          %v443 = vld [vmem:[%s3] sm:$0xff]
          %v444 = vld [vmem:[%s3 + $0x8] sm:$0xff]
          %vm445 = vcmask 261120
          %446 = vst.msk [vmem:[#allocation4] sm:$0xff] %vm445, %v443
          %447 = vst.msk [vmem:[#allocation4 + $0x8] sm:$0xff] %vm445, %v444
          %v448 = vld [vmem:[%s4] sm:$0x3]
          %449 = vst.msk [vmem:[#allocation6] sm:$0x3] %vm436, %v448
          %v450 = vld [vmem:[%s5] sm:$0xff]
          %v451 = vld [vmem:[%s5 + $0x8] sm:$0xff]
          %452 = vst.msk [vmem:[%s12] sm:$0xff] %vm440, %v450
          %453 = vst.msk [vmem:[%s12 + $0x8] sm:$0xff] %vm440, %v451
          %v454 = vld [vmem:[%s6] sm:$0xff]
          %v455 = vld [vmem:[%s6 + $0x8] sm:$0xff]
          %456 = vst.msk [vmem:[%s13] sm:$0xff] %vm440, %v454
          %457 = vst.msk [vmem:[%s13 + $0x8] sm:$0xff] %vm440, %v455
        $region52: #{stdp_run.1} parent=47 // pred_fallthru
          _
        %v458 = vld [vmem:[%s422] sm:$0x3]
        %v459 = vld [vmem:[#allocation2] sm:$0x3]
        %v460 = vld [vmem:[%s9] sm:$0xff]
        %v461 = vld [vmem:[%s9 + $0x8] sm:$0xff]
        %v462 = vld [vmem:[#allocation4] sm:$0xff]
        %v463 = vld [vmem:[#allocation4 + $0x8] sm:$0xff]
        %v464 = vrcp.pop 10.0
        %v465 = vmul.f32 10.0, %v464
        %v466 = vsub.f32 1.0, %v465
        %v467 = vmul.f32 %v464, %v466
        %v468 = vadd.f32 %v464, %v467
        %vm469 = vweird.f32 %v464
        %v470 = vsel %vm469, %v464, %v468
        %v471 = vmul.f32 %v459, %v470
        %v472 = vsub.f32 %v459, %v471
        %v473 = vadd.f32 %v472, %v458
        %vm474 = vcmask 254976
        %475 = vst.msk [vmem:[#allocation2] sm:$0x3] %vm474, %v473
        %vm476 = vcmask 15360
        %v477 = vsel %vm476, %v460, 0.0
        %478 = vadd.xlane.f32.xlu0 %v477
        %v479 = vpop.xlane.xlu0 %478
        %v480 = vsel %vm476, %v461, 0.0
        %481 = vadd.xlane.f32.xlu0 %v480
        %v482 = vpop.xlane.xlu0 %481
        %v483 = vmul.f32 %v479, 0.5
        %v484 = vmul.f32 %v482, 0.5
        %v485 = vand.u32 2147483647, %v462
        %v486 = vand.u32 2147483647, %v463
        %v487 = vadd.f32 %v485, 1e-06
        %v488 = vadd.f32 %v486, 1e-06
        %v489 = vmul.f32 %v487, 0.001
        %v490 = vmul.f32 %v488, 0.001
        %v491 = vmul.f32 %v489, %v483
        %v492 = vmul.f32 %v490, %v484
        %v493 = vsub.f32 %v462, %v491
        %v494 = vsub.f32 %v463, %v492
        %v495 = vmul.f32 %v458, 0.5
        %v496 = vld [vmem:[#allocation6] sm:$0x3]
        %497 = vst.msk [vmem:[#allocation6] sm:$0x3] %vm474, %v495
        %vm498 = vcmask 261120
        %v500 = vsel %vm498, %v493, 0
        %v503 = vsel %vm498, %v494, 0
        %v506 = vsel %vm498, %v496, 0
        %508 = vmatpush.xpose.msra.mxu0 0.0
        %509 = vmatpush.xpose.msra.mxu0 0.0
        %510 = vmatpush.xpose.msra.mxu0 0.0
        %511 = vmatpush.xpose.msra.mxu0 0.0
        %512 = vmatpush.xpose.msra.mxu0 0.0
        %513 = vmatpush.xpose.msra.mxu0 0.0
        %514 = vmatpush.xpose.msra.mxu0 0.0
        %515 = vmatpush.xpose.msra.mxu0 0.0
        %516 = vmatpush.xpose.msra.mxu0 0.0
        %517 = vmatpush.xpose.msra.mxu0 0.0
        %518 = vmatpush.xpose.msra.mxu0 0.0
        %519 = vmatpush.xpose.msra.mxu0 0.0
        %520 = vmatpush.xpose.msra.mxu0 0.0
        %521 = vmatpush.xpose.msra.mxu0 0.0
        %522 = vmatpush.xpose.msra.mxu0 0.0
        %523 = vmatpush.xpose.msra.mxu0 %v506
        %524 = vmatmul.f32.gmra.mxu0 %v500
        %v525 = vpop.f32.mrf.mxu0
        %v526 = vadd.f32 0.0, %v525
        %527 = vmatmul.f32.gmra.mxu0 %v503
        %v528 = vpop.f32.mrf.mxu0
        %v529 = vadd.f32 0.0, %v528
        %530 = vdwg.mxu0
        %v531 = vld [vmem:[%s12] sm:$0xff]
        %v532 = vld [vmem:[%s12 + $0x8] sm:$0xff]
        %533 = vst.msk [vmem:[%s12] sm:$0xff] %vm476, %v526
        %534 = vst.msk [vmem:[%s12 + $0x8] sm:$0xff] %vm476, %v529
        %v535 = vld [vmem:[%s13] sm:$0xff]
        %v536 = vld [vmem:[%s13 + $0x8] sm:$0xff]
        %v537 = vmul.f32 %v531, 50.0
        %v538 = vmul.f32 %v532, 50.0
        %v539 = vadd.f32 %v535, %v537
        %v540 = vadd.f32 %v536, %v538
        %vm541 = vcmp.ge.f32.partialorder %v539, 1.0
        %vm542 = vcmp.ge.f32.partialorder %v540, 1.0
        %v543 = vsel %vm541, 0.0, %v539
        %v544 = vsel %vm542, 0.0, %v540
        %545 = vst.msk [vmem:[%s13] sm:$0xff] %vm476, %v543
        %546 = vst.msk [vmem:[%s13 + $0x8] sm:$0xff] %vm476, %v544
        %v547 = vsel %vm541, 1, 0
        %v548 = vsel %vm542, 1, 0
        %v549 = vcvt.s32.f32 %v547
        %v550 = vcvt.s32.f32 %v548
        %551 = vst.msk [vmem:[%s429] sm:$0xff] %vm476, %v549
        %552 = vst.msk [vmem:[%s429 + $0x8] sm:$0xff] %vm476, %v550
        %v553 = vmul.f32 %v460, %v470
        %v554 = vmul.f32 %v461, %v470
        %v555 = vsub.f32 %v460, %v553
        %v556 = vsub.f32 %v461, %v554
        %v557 = vadd.f32 %v555, %v549
        %v558 = vadd.f32 %v556, %v550
        %559 = vst.msk [vmem:[%s9] sm:$0xff] %vm476, %v557
        %560 = vst.msk [vmem:[%s9 + $0x8] sm:$0xff] %vm476, %v558
        %v561 = vsel %vm474, %v473, 0.0
        %v562 = vrot.slane %v561, 4
        %v563 = vadd.f32 %v561, %v562
        %v564 = vrot.slane %v563, 2
        %v565 = vadd.f32 %v563, %v564
        %v566 = vrot.slane %v565, 1
        %v567 = vadd.f32 %v565, %v566
        %v568 = vmul.f32 %v567, 0.5
        %v569 = vand.u32 2147483647, %v493
        %v570 = vand.u32 2147483647, %v494
        %v571 = vadd.f32 %v569, 1e-06
        %v572 = vadd.f32 %v570, 1e-06
        %v573 = vmul.f32 %v571, 0.001
        %v574 = vmul.f32 %v572, 0.001
        %v575 = vmul.f32 %v573, %v568
        %v576 = vmul.f32 %v574, %v568
        %v577 = vadd.f32 %v493, %v575
        %v578 = vadd.f32 %v494, %v576
        %579 = vst.msk [vmem:[#allocation4] sm:$0xff] %vm498, %v577
        %580 = vst.msk [vmem:[#allocation4 + $0x8] sm:$0xff] %vm498, %v578
        %s581 = scalar_lea.vmem %s422, 2
        %v582 = vld [vmem:[%s581] sm:$0x3]
        %v583 = vld [vmem:[#allocation2] sm:$0x3]
        %v584 = vld [vmem:[%s9] sm:$0xff]
        %v585 = vld [vmem:[%s9 + $0x8] sm:$0xff]
        %v586 = vld [vmem:[#allocation4] sm:$0xff]
        %v587 = vld [vmem:[#allocation4 + $0x8] sm:$0xff]
        %v588 = vmul.f32 %v583, %v470
        %v589 = vsub.f32 %v583, %v588
        %v590 = vadd.f32 %v589, %v582
        %591 = vst.msk [vmem:[#allocation2] sm:$0x3] %vm474, %v590
        %v592 = vsel %vm476, %v584, 0.0
        %593 = vadd.xlane.f32.xlu0 %v592
        %v594 = vpop.xlane.xlu0 %593
        %v595 = vsel %vm476, %v585, 0.0
        %596 = vadd.xlane.f32.xlu0 %v595
        %v597 = vpop.xlane.xlu0 %596
        %v598 = vmul.f32 %v594, 0.5
        %v599 = vmul.f32 %v597, 0.5
        %v600 = vand.u32 2147483647, %v586
        %v601 = vand.u32 2147483647, %v587
        %v602 = vadd.f32 %v600, 1e-06
        %v603 = vadd.f32 %v601, 1e-06
        %v604 = vmul.f32 %v602, 0.001
        %v605 = vmul.f32 %v603, 0.001
        %v606 = vmul.f32 %v604, %v598
        %v607 = vmul.f32 %v605, %v599
        %v608 = vsub.f32 %v586, %v606
        %v609 = vsub.f32 %v587, %v607
        %v610 = vmul.f32 %v582, 0.5
        %v611 = vld [vmem:[#allocation6] sm:$0x3]
        %612 = vst.msk [vmem:[#allocation6] sm:$0x3] %vm474, %v610
        %v614 = vsel %vm498, %v608, 0
        %v617 = vsel %vm498, %v609, 0
        %v620 = vsel %vm498, %v611, 0
        %622 = vmatpush.xpose.msra.mxu0 0.0
        %623 = vmatpush.xpose.msra.mxu0 0.0
        %624 = vmatpush.xpose.msra.mxu0 0.0
        %625 = vmatpush.xpose.msra.mxu0 0.0
        %626 = vmatpush.xpose.msra.mxu0 0.0
        %627 = vmatpush.xpose.msra.mxu0 0.0
        %628 = vmatpush.xpose.msra.mxu0 0.0
        %629 = vmatpush.xpose.msra.mxu0 0.0
        %630 = vmatpush.xpose.msra.mxu0 0.0
        %631 = vmatpush.xpose.msra.mxu0 0.0
        %632 = vmatpush.xpose.msra.mxu0 0.0
        %633 = vmatpush.xpose.msra.mxu0 0.0
        %634 = vmatpush.xpose.msra.mxu0 0.0
        %635 = vmatpush.xpose.msra.mxu0 0.0
        %636 = vmatpush.xpose.msra.mxu0 0.0
        %637 = vmatpush.xpose.msra.mxu0 %v620
        %638 = vmatmul.f32.gmra.mxu0 %v614
        %v639 = vpop.f32.mrf.mxu0
        %v640 = vadd.f32 0.0, %v639
        %641 = vmatmul.f32.gmra.mxu0 %v617
        %v642 = vpop.f32.mrf.mxu0
        %v643 = vadd.f32 0.0, %v642
        %644 = vdwg.mxu0
        %v645 = vld [vmem:[%s12] sm:$0xff]
        %v646 = vld [vmem:[%s12 + $0x8] sm:$0xff]
        %647 = vst.msk [vmem:[%s12] sm:$0xff] %vm476, %v640
        %648 = vst.msk [vmem:[%s12 + $0x8] sm:$0xff] %vm476, %v643
        %v649 = vld [vmem:[%s13] sm:$0xff]
        %v650 = vld [vmem:[%s13 + $0x8] sm:$0xff]
        %v651 = vmul.f32 %v645, 50.0
        %v652 = vmul.f32 %v646, 50.0
        %v653 = vadd.f32 %v649, %v651
        %v654 = vadd.f32 %v650, %v652
        %vm655 = vcmp.ge.f32.partialorder %v653, 1.0
        %vm656 = vcmp.ge.f32.partialorder %v654, 1.0
        %v657 = vsel %vm655, 0.0, %v653
        %v658 = vsel %vm656, 0.0, %v654
        %659 = vst.msk [vmem:[%s13] sm:$0xff] %vm476, %v657
        %660 = vst.msk [vmem:[%s13 + $0x8] sm:$0xff] %vm476, %v658
        %v661 = vsel %vm655, 1, 0
        %v662 = vsel %vm656, 1, 0
        %v663 = vcvt.s32.f32 %v661
        %v664 = vcvt.s32.f32 %v662
        %s665 = scalar_lea.vmem %s429, 16
        %666 = vst.msk [vmem:[%s665] sm:$0xff] %vm476, %v663
        %667 = vst.msk [vmem:[%s665 + $0x8] sm:$0xff] %vm476, %v664
        %v668 = vmul.f32 %v584, %v470
        %v669 = vmul.f32 %v585, %v470
        %v670 = vsub.f32 %v584, %v668
        %v671 = vsub.f32 %v585, %v669
        %v672 = vadd.f32 %v670, %v663
        %v673 = vadd.f32 %v671, %v664
        %674 = vst.msk [vmem:[%s9] sm:$0xff] %vm476, %v672
        %675 = vst.msk [vmem:[%s9 + $0x8] sm:$0xff] %vm476, %v673
        %v676 = vsel %vm474, %v590, 0.0
        %v677 = vrot.slane %v676, 4
        %v678 = vadd.f32 %v676, %v677
        %v679 = vrot.slane %v678, 2
        %v680 = vadd.f32 %v678, %v679
        %v681 = vrot.slane %v680, 1
        %v682 = vadd.f32 %v680, %v681
        %v683 = vmul.f32 %v682, 0.5
        %v684 = vand.u32 2147483647, %v608
        %v685 = vand.u32 2147483647, %v609
        %v686 = vadd.f32 %v684, 1e-06
        %v687 = vadd.f32 %v685, 1e-06
        %v688 = vmul.f32 %v686, 0.001
        %v689 = vmul.f32 %v687, 0.001
        %v690 = vmul.f32 %v688, %v683
        %v691 = vmul.f32 %v689, %v683
        %v692 = vadd.f32 %v608, %v690
        %v693 = vadd.f32 %v609, %v691
        %694 = vst.msk [vmem:[#allocation4] sm:$0xff] %vm498, %v692
        %695 = vst.msk [vmem:[#allocation4 + $0x8] sm:$0xff] %vm498, %v693
        %s696 = scalar_lea.vmem %s422, 4
        %v697 = vld [vmem:[%s696] sm:$0x3]
        %v698 = vld [vmem:[#allocation2] sm:$0x3]
        %v699 = vld [vmem:[%s9] sm:$0xff]
        %v700 = vld [vmem:[%s9 + $0x8] sm:$0xff]
        %v701 = vld [vmem:[#allocation4] sm:$0xff]
        %v702 = vld [vmem:[#allocation4 + $0x8] sm:$0xff]
        %v703 = vmul.f32 %v698, %v470
        %v704 = vsub.f32 %v698, %v703
        %v705 = vadd.f32 %v704, %v697
        %706 = vst.msk [vmem:[#allocation2] sm:$0x3] %vm474, %v705
        %v707 = vsel %vm476, %v699, 0.0
        %708 = vadd.xlane.f32.xlu0 %v707
        %v709 = vpop.xlane.xlu0 %708
        %v710 = vsel %vm476, %v700, 0.0
        %711 = vadd.xlane.f32.xlu0 %v710
        %v712 = vpop.xlane.xlu0 %711
        %v713 = vmul.f32 %v709, 0.5
        %v714 = vmul.f32 %v712, 0.5
        %v715 = vand.u32 2147483647, %v701
        %v716 = vand.u32 2147483647, %v702
        %v717 = vadd.f32 %v715, 1e-06
        %v718 = vadd.f32 %v716, 1e-06
        %v719 = vmul.f32 %v717, 0.001
        %v720 = vmul.f32 %v718, 0.001
        %v721 = vmul.f32 %v719, %v713
        %v722 = vmul.f32 %v720, %v714
        %v723 = vsub.f32 %v701, %v721
        %v724 = vsub.f32 %v702, %v722
        %v725 = vmul.f32 %v697, 0.5
        %v726 = vld [vmem:[#allocation6] sm:$0x3]
        %727 = vst.msk [vmem:[#allocation6] sm:$0x3] %vm474, %v725
        %v729 = vsel %vm498, %v723, 0
        %v732 = vsel %vm498, %v724, 0
        %v735 = vsel %vm498, %v726, 0
        %737 = vmatpush.xpose.msra.mxu0 0.0
        %738 = vmatpush.xpose.msra.mxu0 0.0
        %739 = vmatpush.xpose.msra.mxu0 0.0
        %740 = vmatpush.xpose.msra.mxu0 0.0
        %741 = vmatpush.xpose.msra.mxu0 0.0
        %742 = vmatpush.xpose.msra.mxu0 0.0
        %743 = vmatpush.xpose.msra.mxu0 0.0
        %744 = vmatpush.xpose.msra.mxu0 0.0
        %745 = vmatpush.xpose.msra.mxu0 0.0
        %746 = vmatpush.xpose.msra.mxu0 0.0
        %747 = vmatpush.xpose.msra.mxu0 0.0
        %748 = vmatpush.xpose.msra.mxu0 0.0
        %749 = vmatpush.xpose.msra.mxu0 0.0
        %750 = vmatpush.xpose.msra.mxu0 0.0
        %751 = vmatpush.xpose.msra.mxu0 0.0
        %752 = vmatpush.xpose.msra.mxu0 %v735
        %753 = vmatmul.f32.gmra.mxu0 %v729
        %v754 = vpop.f32.mrf.mxu0
        %v755 = vadd.f32 0.0, %v754
        %756 = vmatmul.f32.gmra.mxu0 %v732
        %v757 = vpop.f32.mrf.mxu0
        %v758 = vadd.f32 0.0, %v757
        %759 = vdwg.mxu0
        %v760 = vld [vmem:[%s12] sm:$0xff]
        %v761 = vld [vmem:[%s12 + $0x8] sm:$0xff]
        %762 = vst.msk [vmem:[%s12] sm:$0xff] %vm476, %v755
        %763 = vst.msk [vmem:[%s12 + $0x8] sm:$0xff] %vm476, %v758
        %v764 = vld [vmem:[%s13] sm:$0xff]
        %v765 = vld [vmem:[%s13 + $0x8] sm:$0xff]
        %v766 = vmul.f32 %v760, 50.0
        %v767 = vmul.f32 %v761, 50.0
        %v768 = vadd.f32 %v764, %v766
        %v769 = vadd.f32 %v765, %v767
        %vm770 = vcmp.ge.f32.partialorder %v768, 1.0
        %vm771 = vcmp.ge.f32.partialorder %v769, 1.0
        %v772 = vsel %vm770, 0.0, %v768
        %v773 = vsel %vm771, 0.0, %v769
        %774 = vst.msk [vmem:[%s13] sm:$0xff] %vm476, %v772
        %775 = vst.msk [vmem:[%s13 + $0x8] sm:$0xff] %vm476, %v773
        %v776 = vsel %vm770, 1, 0
        %v777 = vsel %vm771, 1, 0
        %v778 = vcvt.s32.f32 %v776
        %v779 = vcvt.s32.f32 %v777
        %s780 = scalar_lea.vmem %s429, 32
        %781 = vst.msk [vmem:[%s780] sm:$0xff] %vm476, %v778
        %782 = vst.msk [vmem:[%s780 + $0x8] sm:$0xff] %vm476, %v779
        %v783 = vmul.f32 %v699, %v470
        %v784 = vmul.f32 %v700, %v470
        %v785 = vsub.f32 %v699, %v783
        %v786 = vsub.f32 %v700, %v784
        %v787 = vadd.f32 %v785, %v778
        %v788 = vadd.f32 %v786, %v779
        %789 = vst.msk [vmem:[%s9] sm:$0xff] %vm476, %v787
        %790 = vst.msk [vmem:[%s9 + $0x8] sm:$0xff] %vm476, %v788
        %v791 = vsel %vm474, %v705, 0.0
        %v792 = vrot.slane %v791, 4
        %v793 = vadd.f32 %v791, %v792
        %v794 = vrot.slane %v793, 2
        %v795 = vadd.f32 %v793, %v794
        %v796 = vrot.slane %v795, 1
        %v797 = vadd.f32 %v795, %v796
        %v798 = vmul.f32 %v797, 0.5
        %v799 = vand.u32 2147483647, %v723
        %v800 = vand.u32 2147483647, %v724
        %v801 = vadd.f32 %v799, 1e-06
        %v802 = vadd.f32 %v800, 1e-06
        %v803 = vmul.f32 %v801, 0.001
        %v804 = vmul.f32 %v802, 0.001
        %v805 = vmul.f32 %v803, %v798
        %v806 = vmul.f32 %v804, %v798
        %v807 = vadd.f32 %v723, %v805
        %v808 = vadd.f32 %v724, %v806
        %809 = vst.msk [vmem:[#allocation4] sm:$0xff] %vm498, %v807
        %810 = vst.msk [vmem:[#allocation4 + $0x8] sm:$0xff] %vm498, %v808
        %s811 = scalar_lea.vmem %s422, 6
        %v812 = vld [vmem:[%s811] sm:$0x3]
        %v813 = vld [vmem:[#allocation2] sm:$0x3]
        %v814 = vld [vmem:[%s9] sm:$0xff]
        %v815 = vld [vmem:[%s9 + $0x8] sm:$0xff]
        %v816 = vld [vmem:[#allocation4] sm:$0xff]
        %v817 = vld [vmem:[#allocation4 + $0x8] sm:$0xff]
        %v818 = vmul.f32 %v813, %v470
        %v819 = vsub.f32 %v813, %v818
        %v820 = vadd.f32 %v819, %v812
        %821 = vst.msk [vmem:[#allocation2] sm:$0x3] %vm474, %v820
        %v822 = vsel %vm476, %v814, 0.0
        %823 = vadd.xlane.f32.xlu0 %v822
        %v824 = vpop.xlane.xlu0 %823
        %v825 = vsel %vm476, %v815, 0.0
        %826 = vadd.xlane.f32.xlu0 %v825
        %v827 = vpop.xlane.xlu0 %826
        %v828 = vmul.f32 %v824, 0.5
        %v829 = vmul.f32 %v827, 0.5
        %v830 = vand.u32 2147483647, %v816
        %v831 = vand.u32 2147483647, %v817
        %v832 = vadd.f32 %v830, 1e-06
        %v833 = vadd.f32 %v831, 1e-06
        %v834 = vmul.f32 %v832, 0.001
        %v835 = vmul.f32 %v833, 0.001
        %v836 = vmul.f32 %v834, %v828
        %v837 = vmul.f32 %v835, %v829
        %v838 = vsub.f32 %v816, %v836
        %v839 = vsub.f32 %v817, %v837
        %v840 = vmul.f32 %v812, 0.5
        %v841 = vld [vmem:[#allocation6] sm:$0x3]
        %842 = vst.msk [vmem:[#allocation6] sm:$0x3] %vm474, %v840
        %v844 = vsel %vm498, %v838, 0
        %v847 = vsel %vm498, %v839, 0
        %v850 = vsel %vm498, %v841, 0
        %852 = vmatpush.xpose.msra.mxu0 0.0
        %853 = vmatpush.xpose.msra.mxu0 0.0
        %854 = vmatpush.xpose.msra.mxu0 0.0
        %855 = vmatpush.xpose.msra.mxu0 0.0
        %856 = vmatpush.xpose.msra.mxu0 0.0
        %857 = vmatpush.xpose.msra.mxu0 0.0
        %858 = vmatpush.xpose.msra.mxu0 0.0
        %859 = vmatpush.xpose.msra.mxu0 0.0
        %860 = vmatpush.xpose.msra.mxu0 0.0
        %861 = vmatpush.xpose.msra.mxu0 0.0
        %862 = vmatpush.xpose.msra.mxu0 0.0
        %863 = vmatpush.xpose.msra.mxu0 0.0
        %864 = vmatpush.xpose.msra.mxu0 0.0
        %865 = vmatpush.xpose.msra.mxu0 0.0
        %866 = vmatpush.xpose.msra.mxu0 0.0
        %867 = vmatpush.xpose.msra.mxu0 %v850
        %868 = vmatmul.f32.gmra.mxu0 %v844
        %v869 = vpop.f32.mrf.mxu0
        %v870 = vadd.f32 0.0, %v869
        %871 = vmatmul.f32.gmra.mxu0 %v847
        %v872 = vpop.f32.mrf.mxu0
        %v873 = vadd.f32 0.0, %v872
        %874 = vdwg.mxu0
        %v875 = vld [vmem:[%s12] sm:$0xff]
        %v876 = vld [vmem:[%s12 + $0x8] sm:$0xff]
        %877 = vst.msk [vmem:[%s12] sm:$0xff] %vm476, %v870
        %878 = vst.msk [vmem:[%s12 + $0x8] sm:$0xff] %vm476, %v873
        %v879 = vld [vmem:[%s13] sm:$0xff]
        %v880 = vld [vmem:[%s13 + $0x8] sm:$0xff]
        %v881 = vmul.f32 %v875, 50.0
        %v882 = vmul.f32 %v876, 50.0
        %v883 = vadd.f32 %v879, %v881
        %v884 = vadd.f32 %v880, %v882
        %vm885 = vcmp.ge.f32.partialorder %v883, 1.0
        %vm886 = vcmp.ge.f32.partialorder %v884, 1.0
        %v887 = vsel %vm885, 0.0, %v883
        %v888 = vsel %vm886, 0.0, %v884
        %889 = vst.msk [vmem:[%s13] sm:$0xff] %vm476, %v887
        %890 = vst.msk [vmem:[%s13 + $0x8] sm:$0xff] %vm476, %v888
        %v891 = vsel %vm885, 1, 0
        %v892 = vsel %vm886, 1, 0
        %v893 = vcvt.s32.f32 %v891
        %v894 = vcvt.s32.f32 %v892
        %s895 = scalar_lea.vmem %s429, 48
        %896 = vst.msk [vmem:[%s895] sm:$0xff] %vm476, %v893
        %897 = vst.msk [vmem:[%s895 + $0x8] sm:$0xff] %vm476, %v894
        %v898 = vmul.f32 %v814, %v470
        %v899 = vmul.f32 %v815, %v470
        %v900 = vsub.f32 %v814, %v898
        %v901 = vsub.f32 %v815, %v899
        %v902 = vadd.f32 %v900, %v893
        %v903 = vadd.f32 %v901, %v894
        %904 = vst.msk [vmem:[%s9] sm:$0xff] %vm476, %v902
        %905 = vst.msk [vmem:[%s9 + $0x8] sm:$0xff] %vm476, %v903
        %v906 = vsel %vm474, %v820, 0.0
        %v907 = vrot.slane %v906, 4
        %v908 = vadd.f32 %v906, %v907
        %v909 = vrot.slane %v908, 2
        %v910 = vadd.f32 %v908, %v909
        %v911 = vrot.slane %v910, 1
        %v912 = vadd.f32 %v910, %v911
        %v913 = vmul.f32 %v912, 0.5
        %v914 = vand.u32 2147483647, %v838
        %v915 = vand.u32 2147483647, %v839
        %v916 = vadd.f32 %v914, 1e-06
        %v917 = vadd.f32 %v915, 1e-06
        %v918 = vmul.f32 %v916, 0.001
        %v919 = vmul.f32 %v917, 0.001
        %v920 = vmul.f32 %v918, %v913
        %v921 = vmul.f32 %v919, %v913
        %v922 = vadd.f32 %v838, %v920
        %v923 = vadd.f32 %v839, %v921
        %924 = vst.msk [vmem:[#allocation4] sm:$0xff] %vm498, %v922
        %925 = vst.msk [vmem:[#allocation4 + $0x8] sm:$0xff] %vm498, %v923
        %s926 = scalar_lea.vmem %s422, 8
        %v927 = vld [vmem:[%s926] sm:$0x3]
        %v928 = vld [vmem:[#allocation2] sm:$0x3]
        %v929 = vld [vmem:[%s9] sm:$0xff]
        %v930 = vld [vmem:[%s9 + $0x8] sm:$0xff]
        %v931 = vld [vmem:[#allocation4] sm:$0xff]
        %v932 = vld [vmem:[#allocation4 + $0x8] sm:$0xff]
        %v933 = vmul.f32 %v928, %v470
        %v934 = vsub.f32 %v928, %v933
        %v935 = vadd.f32 %v934, %v927
        %936 = vst.msk [vmem:[#allocation2] sm:$0x3] %vm474, %v935
        %v937 = vsel %vm476, %v929, 0.0
        %938 = vadd.xlane.f32.xlu0 %v937
        %v939 = vpop.xlane.xlu0 %938
        %v940 = vsel %vm476, %v930, 0.0
        %941 = vadd.xlane.f32.xlu0 %v940
        %v942 = vpop.xlane.xlu0 %941
        %v943 = vmul.f32 %v939, 0.5
        %v944 = vmul.f32 %v942, 0.5
        %v945 = vand.u32 2147483647, %v931
        %v946 = vand.u32 2147483647, %v932
        %v947 = vadd.f32 %v945, 1e-06
        %v948 = vadd.f32 %v946, 1e-06
        %v949 = vmul.f32 %v947, 0.001
        %v950 = vmul.f32 %v948, 0.001
        %v951 = vmul.f32 %v949, %v943
        %v952 = vmul.f32 %v950, %v944
        %v953 = vsub.f32 %v931, %v951
        %v954 = vsub.f32 %v932, %v952
        %v955 = vmul.f32 %v927, 0.5
        %v956 = vld [vmem:[#allocation6] sm:$0x3]
        %957 = vst.msk [vmem:[#allocation6] sm:$0x3] %vm474, %v955
        %v959 = vsel %vm498, %v953, 0
        %v962 = vsel %vm498, %v954, 0
        %v965 = vsel %vm498, %v956, 0
        %967 = vmatpush.xpose.msra.mxu0 0.0
        %968 = vmatpush.xpose.msra.mxu0 0.0
        %969 = vmatpush.xpose.msra.mxu0 0.0
        %970 = vmatpush.xpose.msra.mxu0 0.0
        %971 = vmatpush.xpose.msra.mxu0 0.0
        %972 = vmatpush.xpose.msra.mxu0 0.0
        %973 = vmatpush.xpose.msra.mxu0 0.0
        %974 = vmatpush.xpose.msra.mxu0 0.0
        %975 = vmatpush.xpose.msra.mxu0 0.0
        %976 = vmatpush.xpose.msra.mxu0 0.0
        %977 = vmatpush.xpose.msra.mxu0 0.0
        %978 = vmatpush.xpose.msra.mxu0 0.0
        %979 = vmatpush.xpose.msra.mxu0 0.0
        %980 = vmatpush.xpose.msra.mxu0 0.0
        %981 = vmatpush.xpose.msra.mxu0 0.0
        %982 = vmatpush.xpose.msra.mxu0 %v965
        %983 = vmatmul.f32.gmra.mxu0 %v959
        %v984 = vpop.f32.mrf.mxu0
        %v985 = vadd.f32 0.0, %v984
        %986 = vmatmul.f32.gmra.mxu0 %v962
        %v987 = vpop.f32.mrf.mxu0
        %v988 = vadd.f32 0.0, %v987
        %989 = vdwg.mxu0
        %v990 = vld [vmem:[%s12] sm:$0xff]
        %v991 = vld [vmem:[%s12 + $0x8] sm:$0xff]
        %992 = vst.msk [vmem:[%s12] sm:$0xff] %vm476, %v985
        %993 = vst.msk [vmem:[%s12 + $0x8] sm:$0xff] %vm476, %v988
        %v994 = vld [vmem:[%s13] sm:$0xff]
        %v995 = vld [vmem:[%s13 + $0x8] sm:$0xff]
        %v996 = vmul.f32 %v990, 50.0
        %v997 = vmul.f32 %v991, 50.0
        %v998 = vadd.f32 %v994, %v996
        %v999 = vadd.f32 %v995, %v997
        %vm1000 = vcmp.ge.f32.partialorder %v998, 1.0
        %vm1001 = vcmp.ge.f32.partialorder %v999, 1.0
        %v1002 = vsel %vm1000, 0.0, %v998
        %v1003 = vsel %vm1001, 0.0, %v999
        %1004 = vst.msk [vmem:[%s13] sm:$0xff] %vm476, %v1002
        %1005 = vst.msk [vmem:[%s13 + $0x8] sm:$0xff] %vm476, %v1003
        %v1006 = vsel %vm1000, 1, 0
        %v1007 = vsel %vm1001, 1, 0
        %v1008 = vcvt.s32.f32 %v1006
        %v1009 = vcvt.s32.f32 %v1007
        %s1010 = scalar_lea.vmem %s429, 64
        %1011 = vst.msk [vmem:[%s1010] sm:$0xff] %vm476, %v1008
        %1012 = vst.msk [vmem:[%s1010 + $0x8] sm:$0xff] %vm476, %v1009
        %v1013 = vmul.f32 %v929, %v470
        %v1014 = vmul.f32 %v930, %v470
        %v1015 = vsub.f32 %v929, %v1013
        %v1016 = vsub.f32 %v930, %v1014
        %v1017 = vadd.f32 %v1015, %v1008
        %v1018 = vadd.f32 %v1016, %v1009
        %1019 = vst.msk [vmem:[%s9] sm:$0xff] %vm476, %v1017
        %1020 = vst.msk [vmem:[%s9 + $0x8] sm:$0xff] %vm476, %v1018
        %v1021 = vsel %vm474, %v935, 0.0
        %v1022 = vrot.slane %v1021, 4
        %v1023 = vadd.f32 %v1021, %v1022
        %v1024 = vrot.slane %v1023, 2
        %v1025 = vadd.f32 %v1023, %v1024
        %v1026 = vrot.slane %v1025, 1
        %v1027 = vadd.f32 %v1025, %v1026
        %v1028 = vmul.f32 %v1027, 0.5
        %v1029 = vand.u32 2147483647, %v953
        %v1030 = vand.u32 2147483647, %v954
        %v1031 = vadd.f32 %v1029, 1e-06
        %v1032 = vadd.f32 %v1030, 1e-06
        %v1033 = vmul.f32 %v1031, 0.001
        %v1034 = vmul.f32 %v1032, 0.001
        %v1035 = vmul.f32 %v1033, %v1028
        %v1036 = vmul.f32 %v1034, %v1028
        %v1037 = vadd.f32 %v953, %v1035
        %v1038 = vadd.f32 %v954, %v1036
        %1039 = vst.msk [vmem:[#allocation4] sm:$0xff] %vm498, %v1037
        %1040 = vst.msk [vmem:[#allocation4 + $0x8] sm:$0xff] %vm498, %v1038
        %s1041 = scalar_lea.vmem %s422, 10
        %v1042 = vld [vmem:[%s1041] sm:$0x3]
        %v1043 = vld [vmem:[#allocation2] sm:$0x3]
        %v1044 = vld [vmem:[%s9] sm:$0xff]
        %v1045 = vld [vmem:[%s9 + $0x8] sm:$0xff]
        %v1046 = vld [vmem:[#allocation4] sm:$0xff]
        %v1047 = vld [vmem:[#allocation4 + $0x8] sm:$0xff]
        %v1048 = vmul.f32 %v1043, %v470
        %v1049 = vsub.f32 %v1043, %v1048
        %v1050 = vadd.f32 %v1049, %v1042
        %1051 = vst.msk [vmem:[#allocation2] sm:$0x3] %vm474, %v1050
        %v1052 = vsel %vm476, %v1044, 0.0
        %1053 = vadd.xlane.f32.xlu0 %v1052
        %v1054 = vpop.xlane.xlu0 %1053
        %v1055 = vsel %vm476, %v1045, 0.0
        %1056 = vadd.xlane.f32.xlu0 %v1055
        %v1057 = vpop.xlane.xlu0 %1056
        %v1058 = vmul.f32 %v1054, 0.5
        %v1059 = vmul.f32 %v1057, 0.5
        %v1060 = vand.u32 2147483647, %v1046
        %v1061 = vand.u32 2147483647, %v1047
        %v1062 = vadd.f32 %v1060, 1e-06
        %v1063 = vadd.f32 %v1061, 1e-06
        %v1064 = vmul.f32 %v1062, 0.001
        %v1065 = vmul.f32 %v1063, 0.001
        %v1066 = vmul.f32 %v1064, %v1058
        %v1067 = vmul.f32 %v1065, %v1059
        %v1068 = vsub.f32 %v1046, %v1066
        %v1069 = vsub.f32 %v1047, %v1067
        %v1070 = vmul.f32 %v1042, 0.5
        %v1071 = vld [vmem:[#allocation6] sm:$0x3]
        %1072 = vst.msk [vmem:[#allocation6] sm:$0x3] %vm474, %v1070
        %v1074 = vsel %vm498, %v1068, 0
        %v1077 = vsel %vm498, %v1069, 0
        %v1080 = vsel %vm498, %v1071, 0
        %1082 = vmatpush.xpose.msra.mxu0 0.0
        %1083 = vmatpush.xpose.msra.mxu0 0.0
        %1084 = vmatpush.xpose.msra.mxu0 0.0
        %1085 = vmatpush.xpose.msra.mxu0 0.0
        %1086 = vmatpush.xpose.msra.mxu0 0.0
        %1087 = vmatpush.xpose.msra.mxu0 0.0
        %1088 = vmatpush.xpose.msra.mxu0 0.0
        %1089 = vmatpush.xpose.msra.mxu0 0.0
        %1090 = vmatpush.xpose.msra.mxu0 0.0
        %1091 = vmatpush.xpose.msra.mxu0 0.0
        %1092 = vmatpush.xpose.msra.mxu0 0.0
        %1093 = vmatpush.xpose.msra.mxu0 0.0
        %1094 = vmatpush.xpose.msra.mxu0 0.0
        %1095 = vmatpush.xpose.msra.mxu0 0.0
        %1096 = vmatpush.xpose.msra.mxu0 0.0
        %1097 = vmatpush.xpose.msra.mxu0 %v1080
        %1098 = vmatmul.f32.gmra.mxu0 %v1074
        %v1099 = vpop.f32.mrf.mxu0
        %v1100 = vadd.f32 0.0, %v1099
        %1101 = vmatmul.f32.gmra.mxu0 %v1077
        %v1102 = vpop.f32.mrf.mxu0
        %v1103 = vadd.f32 0.0, %v1102
        %1104 = vdwg.mxu0
        %v1105 = vld [vmem:[%s12] sm:$0xff]
        %v1106 = vld [vmem:[%s12 + $0x8] sm:$0xff]
        %1107 = vst.msk [vmem:[%s12] sm:$0xff] %vm476, %v1100
        %1108 = vst.msk [vmem:[%s12 + $0x8] sm:$0xff] %vm476, %v1103
        %v1109 = vld [vmem:[%s13] sm:$0xff]
        %v1110 = vld [vmem:[%s13 + $0x8] sm:$0xff]
        %v1111 = vmul.f32 %v1105, 50.0
        %v1112 = vmul.f32 %v1106, 50.0
        %v1113 = vadd.f32 %v1109, %v1111
        %v1114 = vadd.f32 %v1110, %v1112
        %vm1115 = vcmp.ge.f32.partialorder %v1113, 1.0
        %vm1116 = vcmp.ge.f32.partialorder %v1114, 1.0
        %v1117 = vsel %vm1115, 0.0, %v1113
        %v1118 = vsel %vm1116, 0.0, %v1114
        %1119 = vst.msk [vmem:[%s13] sm:$0xff] %vm476, %v1117
        %1120 = vst.msk [vmem:[%s13 + $0x8] sm:$0xff] %vm476, %v1118
        %v1121 = vsel %vm1115, 1, 0
        %v1122 = vsel %vm1116, 1, 0
        %v1123 = vcvt.s32.f32 %v1121
        %v1124 = vcvt.s32.f32 %v1122
        %s1125 = scalar_lea.vmem %s429, 80
        %1126 = vst.msk [vmem:[%s1125] sm:$0xff] %vm476, %v1123
        %1127 = vst.msk [vmem:[%s1125 + $0x8] sm:$0xff] %vm476, %v1124
        %v1128 = vmul.f32 %v1044, %v470
        %v1129 = vmul.f32 %v1045, %v470
        %v1130 = vsub.f32 %v1044, %v1128
        %v1131 = vsub.f32 %v1045, %v1129
        %v1132 = vadd.f32 %v1130, %v1123
        %v1133 = vadd.f32 %v1131, %v1124
        %1134 = vst.msk [vmem:[%s9] sm:$0xff] %vm476, %v1132
        %1135 = vst.msk [vmem:[%s9 + $0x8] sm:$0xff] %vm476, %v1133
        %v1136 = vsel %vm474, %v1050, 0.0
        %v1137 = vrot.slane %v1136, 4
        %v1138 = vadd.f32 %v1136, %v1137
        %v1139 = vrot.slane %v1138, 2
        %v1140 = vadd.f32 %v1138, %v1139
        %v1141 = vrot.slane %v1140, 1
        %v1142 = vadd.f32 %v1140, %v1141
        %v1143 = vmul.f32 %v1142, 0.5
        %v1144 = vand.u32 2147483647, %v1068
        %v1145 = vand.u32 2147483647, %v1069
        %v1146 = vadd.f32 %v1144, 1e-06
        %v1147 = vadd.f32 %v1145, 1e-06
        %v1148 = vmul.f32 %v1146, 0.001
        %v1149 = vmul.f32 %v1147, 0.001
        %v1150 = vmul.f32 %v1148, %v1143
        %v1151 = vmul.f32 %v1149, %v1143
        %v1152 = vadd.f32 %v1068, %v1150
        %v1153 = vadd.f32 %v1069, %v1151
        %1154 = vst.msk [vmem:[#allocation4] sm:$0xff] %vm498, %v1152
        %1155 = vst.msk [vmem:[#allocation4 + $0x8] sm:$0xff] %vm498, %v1153
        %s1156 = scalar_lea.vmem %s422, 12
        %v1157 = vld [vmem:[%s1156] sm:$0x3]
        %v1158 = vld [vmem:[#allocation2] sm:$0x3]
        %v1159 = vld [vmem:[%s9] sm:$0xff]
        %v1160 = vld [vmem:[%s9 + $0x8] sm:$0xff]
        %v1161 = vld [vmem:[#allocation4] sm:$0xff]
        %v1162 = vld [vmem:[#allocation4 + $0x8] sm:$0xff]
        %v1163 = vmul.f32 %v1158, %v470
        %v1164 = vsub.f32 %v1158, %v1163
        %v1165 = vadd.f32 %v1164, %v1157
        %1166 = vst.msk [vmem:[#allocation2] sm:$0x3] %vm474, %v1165
        %v1167 = vsel %vm476, %v1159, 0.0
        %1168 = vadd.xlane.f32.xlu0 %v1167
        %v1169 = vpop.xlane.xlu0 %1168
        %v1170 = vsel %vm476, %v1160, 0.0
        %1171 = vadd.xlane.f32.xlu0 %v1170
        %v1172 = vpop.xlane.xlu0 %1171
        %v1173 = vmul.f32 %v1169, 0.5
        %v1174 = vmul.f32 %v1172, 0.5
        %v1175 = vand.u32 2147483647, %v1161
        %v1176 = vand.u32 2147483647, %v1162
        %v1177 = vadd.f32 %v1175, 1e-06
        %v1178 = vadd.f32 %v1176, 1e-06
        %v1179 = vmul.f32 %v1177, 0.001
        %v1180 = vmul.f32 %v1178, 0.001
        %v1181 = vmul.f32 %v1179, %v1173
        %v1182 = vmul.f32 %v1180, %v1174
        %v1183 = vsub.f32 %v1161, %v1181
        %v1184 = vsub.f32 %v1162, %v1182
        %v1185 = vmul.f32 %v1157, 0.5
        %v1186 = vld [vmem:[#allocation6] sm:$0x3]
        %1187 = vst.msk [vmem:[#allocation6] sm:$0x3] %vm474, %v1185
        %v1189 = vsel %vm498, %v1183, 0
        %v1192 = vsel %vm498, %v1184, 0
        %v1195 = vsel %vm498, %v1186, 0
        %1197 = vmatpush.xpose.msra.mxu0 0.0
        %1198 = vmatpush.xpose.msra.mxu0 0.0
        %1199 = vmatpush.xpose.msra.mxu0 0.0
        %1200 = vmatpush.xpose.msra.mxu0 0.0
        %1201 = vmatpush.xpose.msra.mxu0 0.0
        %1202 = vmatpush.xpose.msra.mxu0 0.0
        %1203 = vmatpush.xpose.msra.mxu0 0.0
        %1204 = vmatpush.xpose.msra.mxu0 0.0
        %1205 = vmatpush.xpose.msra.mxu0 0.0
        %1206 = vmatpush.xpose.msra.mxu0 0.0
        %1207 = vmatpush.xpose.msra.mxu0 0.0
        %1208 = vmatpush.xpose.msra.mxu0 0.0
        %1209 = vmatpush.xpose.msra.mxu0 0.0
        %1210 = vmatpush.xpose.msra.mxu0 0.0
        %1211 = vmatpush.xpose.msra.mxu0 0.0
        %1212 = vmatpush.xpose.msra.mxu0 %v1195
        %1213 = vmatmul.f32.gmra.mxu0 %v1189
        %v1214 = vpop.f32.mrf.mxu0
        %v1215 = vadd.f32 0.0, %v1214
        %1216 = vmatmul.f32.gmra.mxu0 %v1192
        %v1217 = vpop.f32.mrf.mxu0
        %v1218 = vadd.f32 0.0, %v1217
        %1219 = vdwg.mxu0
        %v1220 = vld [vmem:[%s12] sm:$0xff]
        %v1221 = vld [vmem:[%s12 + $0x8] sm:$0xff]
        %1222 = vst.msk [vmem:[%s12] sm:$0xff] %vm476, %v1215
        %1223 = vst.msk [vmem:[%s12 + $0x8] sm:$0xff] %vm476, %v1218
        %v1224 = vld [vmem:[%s13] sm:$0xff]
        %v1225 = vld [vmem:[%s13 + $0x8] sm:$0xff]
        %v1226 = vmul.f32 %v1220, 50.0
        %v1227 = vmul.f32 %v1221, 50.0
        %v1228 = vadd.f32 %v1224, %v1226
        %v1229 = vadd.f32 %v1225, %v1227
        %vm1230 = vcmp.ge.f32.partialorder %v1228, 1.0
        %vm1231 = vcmp.ge.f32.partialorder %v1229, 1.0
        %v1232 = vsel %vm1230, 0.0, %v1228
        %v1233 = vsel %vm1231, 0.0, %v1229
        %1234 = vst.msk [vmem:[%s13] sm:$0xff] %vm476, %v1232
        %1235 = vst.msk [vmem:[%s13 + $0x8] sm:$0xff] %vm476, %v1233
        %v1236 = vsel %vm1230, 1, 0
        %v1237 = vsel %vm1231, 1, 0
        %v1238 = vcvt.s32.f32 %v1236
        %v1239 = vcvt.s32.f32 %v1237
        %s1240 = scalar_lea.vmem %s429, 96
        %1241 = vst.msk [vmem:[%s1240] sm:$0xff] %vm476, %v1238
        %1242 = vst.msk [vmem:[%s1240 + $0x8] sm:$0xff] %vm476, %v1239
        %v1243 = vmul.f32 %v1159, %v470
        %v1244 = vmul.f32 %v1160, %v470
        %v1245 = vsub.f32 %v1159, %v1243
        %v1246 = vsub.f32 %v1160, %v1244
        %v1247 = vadd.f32 %v1245, %v1238
        %v1248 = vadd.f32 %v1246, %v1239
        %1249 = vst.msk [vmem:[%s9] sm:$0xff] %vm476, %v1247
        %1250 = vst.msk [vmem:[%s9 + $0x8] sm:$0xff] %vm476, %v1248
        %v1251 = vsel %vm474, %v1165, 0.0
        %v1252 = vrot.slane %v1251, 4
        %v1253 = vadd.f32 %v1251, %v1252
        %v1254 = vrot.slane %v1253, 2
        %v1255 = vadd.f32 %v1253, %v1254
        %v1256 = vrot.slane %v1255, 1
        %v1257 = vadd.f32 %v1255, %v1256
        %v1258 = vmul.f32 %v1257, 0.5
        %v1259 = vand.u32 2147483647, %v1183
        %v1260 = vand.u32 2147483647, %v1184
        %v1261 = vadd.f32 %v1259, 1e-06
        %v1262 = vadd.f32 %v1260, 1e-06
        %v1263 = vmul.f32 %v1261, 0.001
        %v1264 = vmul.f32 %v1262, 0.001
        %v1265 = vmul.f32 %v1263, %v1258
        %v1266 = vmul.f32 %v1264, %v1258
        %v1267 = vadd.f32 %v1183, %v1265
        %v1268 = vadd.f32 %v1184, %v1266
        %1269 = vst.msk [vmem:[#allocation4] sm:$0xff] %vm498, %v1267
        %1270 = vst.msk [vmem:[#allocation4 + $0x8] sm:$0xff] %vm498, %v1268
        %s1271 = scalar_lea.vmem %s422, 14
        %v1272 = vld [vmem:[%s1271] sm:$0x3]
        %v1273 = vld [vmem:[#allocation2] sm:$0x3]
        %v1274 = vld [vmem:[%s9] sm:$0xff]
        %v1275 = vld [vmem:[%s9 + $0x8] sm:$0xff]
        %v1276 = vld [vmem:[#allocation4] sm:$0xff]
        %v1277 = vld [vmem:[#allocation4 + $0x8] sm:$0xff]
        %v1278 = vmul.f32 %v1273, %v470
        %v1279 = vsub.f32 %v1273, %v1278
        %v1280 = vadd.f32 %v1279, %v1272
        %1281 = vst.msk [vmem:[#allocation2] sm:$0x3] %vm474, %v1280
        %v1282 = vsel %vm476, %v1274, 0.0
        %1283 = vadd.xlane.f32.xlu0 %v1282
        %v1284 = vpop.xlane.xlu0 %1283
        %v1285 = vsel %vm476, %v1275, 0.0
        %1286 = vadd.xlane.f32.xlu0 %v1285
        %v1287 = vpop.xlane.xlu0 %1286
        %v1288 = vmul.f32 %v1284, 0.5
        %v1289 = vmul.f32 %v1287, 0.5
        %v1290 = vand.u32 2147483647, %v1276
        %v1291 = vand.u32 2147483647, %v1277
        %v1292 = vadd.f32 %v1290, 1e-06
        %v1293 = vadd.f32 %v1291, 1e-06
        %v1294 = vmul.f32 %v1292, 0.001
        %v1295 = vmul.f32 %v1293, 0.001
        %v1296 = vmul.f32 %v1294, %v1288
        %v1297 = vmul.f32 %v1295, %v1289
        %v1298 = vsub.f32 %v1276, %v1296
        %v1299 = vsub.f32 %v1277, %v1297
        %v1300 = vmul.f32 %v1272, 0.5
        %v1301 = vld [vmem:[#allocation6] sm:$0x3]
        %1302 = vst.msk [vmem:[#allocation6] sm:$0x3] %vm474, %v1300
        %v1304 = vsel %vm498, %v1298, 0
        %v1307 = vsel %vm498, %v1299, 0
        %v1310 = vsel %vm498, %v1301, 0
        %1312 = vmatpush.xpose.msra.mxu0 0.0
        %1313 = vmatpush.xpose.msra.mxu0 0.0
        %1314 = vmatpush.xpose.msra.mxu0 0.0
        %1315 = vmatpush.xpose.msra.mxu0 0.0
        %1316 = vmatpush.xpose.msra.mxu0 0.0
        %1317 = vmatpush.xpose.msra.mxu0 0.0
        %1318 = vmatpush.xpose.msra.mxu0 0.0
        %1319 = vmatpush.xpose.msra.mxu0 0.0
        %1320 = vmatpush.xpose.msra.mxu0 0.0
        %1321 = vmatpush.xpose.msra.mxu0 0.0
        %1322 = vmatpush.xpose.msra.mxu0 0.0
        %1323 = vmatpush.xpose.msra.mxu0 0.0
        %1324 = vmatpush.xpose.msra.mxu0 0.0
        %1325 = vmatpush.xpose.msra.mxu0 0.0
        %1326 = vmatpush.xpose.msra.mxu0 0.0
        %1327 = vmatpush.xpose.msra.mxu0 %v1310
        %1328 = vmatmul.f32.gmra.mxu0 %v1304
        %v1329 = vpop.f32.mrf.mxu0
        %v1330 = vadd.f32 0.0, %v1329
        %1331 = vmatmul.f32.gmra.mxu0 %v1307
        %v1332 = vpop.f32.mrf.mxu0
        %v1333 = vadd.f32 0.0, %v1332
        %1334 = vdwg.mxu0
        %v1335 = vld [vmem:[%s12] sm:$0xff]
        %v1336 = vld [vmem:[%s12 + $0x8] sm:$0xff]
        %1337 = vst.msk [vmem:[%s12] sm:$0xff] %vm476, %v1330
        %1338 = vst.msk [vmem:[%s12 + $0x8] sm:$0xff] %vm476, %v1333
        %v1339 = vld [vmem:[%s13] sm:$0xff]
        %v1340 = vld [vmem:[%s13 + $0x8] sm:$0xff]
        %v1341 = vmul.f32 %v1335, 50.0
        %v1342 = vmul.f32 %v1336, 50.0
        %v1343 = vadd.f32 %v1339, %v1341
        %v1344 = vadd.f32 %v1340, %v1342
        %vm1345 = vcmp.ge.f32.partialorder %v1343, 1.0
        %vm1346 = vcmp.ge.f32.partialorder %v1344, 1.0
        %v1347 = vsel %vm1345, 0.0, %v1343
        %v1348 = vsel %vm1346, 0.0, %v1344
        %1349 = vst.msk [vmem:[%s13] sm:$0xff] %vm476, %v1347
        %1350 = vst.msk [vmem:[%s13 + $0x8] sm:$0xff] %vm476, %v1348
        %v1351 = vsel %vm1345, 1, 0
        %v1352 = vsel %vm1346, 1, 0
        %v1353 = vcvt.s32.f32 %v1351
        %v1354 = vcvt.s32.f32 %v1352
        %s1355 = scalar_lea.vmem %s429, 112
        %1356 = vst.msk [vmem:[%s1355] sm:$0xff] %vm476, %v1353
        %1357 = vst.msk [vmem:[%s1355 + $0x8] sm:$0xff] %vm476, %v1354
        %v1358 = vmul.f32 %v1274, %v470
        %v1359 = vmul.f32 %v1275, %v470
        %v1360 = vsub.f32 %v1274, %v1358
        %v1361 = vsub.f32 %v1275, %v1359
        %v1362 = vadd.f32 %v1360, %v1353
        %v1363 = vadd.f32 %v1361, %v1354
        %1364 = vst.msk [vmem:[%s9] sm:$0xff] %vm476, %v1362
        %1365 = vst.msk [vmem:[%s9 + $0x8] sm:$0xff] %vm476, %v1363
        %v1366 = vsel %vm474, %v1280, 0.0
        %v1367 = vrot.slane %v1366, 4
        %v1368 = vadd.f32 %v1366, %v1367
        %v1369 = vrot.slane %v1368, 2
        %v1370 = vadd.f32 %v1368, %v1369
        %v1371 = vrot.slane %v1370, 1
        %v1372 = vadd.f32 %v1370, %v1371
        %v1373 = vmul.f32 %v1372, 0.5
        %v1374 = vand.u32 2147483647, %v1298
        %v1375 = vand.u32 2147483647, %v1299
        %v1376 = vadd.f32 %v1374, 1e-06
        %v1377 = vadd.f32 %v1375, 1e-06
        %v1378 = vmul.f32 %v1376, 0.001
        %v1379 = vmul.f32 %v1377, 0.001
        %v1380 = vmul.f32 %v1378, %v1373
        %v1381 = vmul.f32 %v1379, %v1373
        %v1382 = vadd.f32 %v1298, %v1380
        %v1383 = vadd.f32 %v1299, %v1381
        %1384 = vst.msk [vmem:[#allocation4] sm:$0xff] %vm498, %v1382
        %1385 = vst.msk [vmem:[#allocation4 + $0x8] sm:$0xff] %vm498, %v1383
        %s1386 = smul.u32 8, %s27
        %p1387 = scmp.lt.s32.totalorder %s1386, 63
        %s1388 = scalar_select %p1387, %s1386, 63
        %s1389 = smul.addr %s1388, 2
        %s1390 = smul.addr %s1389, 8
        %s1391 = scalar_lea.vmem %s7, %s1390
        // Predicated region
        $region53: #{stdp_run.1} parent=47 // pred_check
          %p1392 = pneg %p197
        $region54: #{stdp_run.1} parent=47 // pred_check_branch
          %1394 = sbr.rel (%p1392) target = $region56
        $region55: #{stdp_run.1} parent=47 // pred_region
          %s1395 = smul.u32 8, %s27
        $region56: #{stdp_run.1} parent=47 // pred_fallthru
          _
        // Predicated region
        $region57: #{stdp_run.1} parent=47 // pred_check
          %p1396 = pneg %p218
        $region58: #{stdp_run.1} parent=47 // pred_check_branch
          %1398 = sbr.rel (%p1396) target = $region60
        $region59: #{stdp_run.1} parent=47 // pred_region
          %1400 = vsyncadd [#allocation3], 0
          %s1402 = sshll.u32 [#allocation2], 4
          %s1403 = int_to_ptr.vmem [resolvable:$true] %s1402
          %s1404 = sshll.u32 %s8, 4
          %s1405 = int_to_ptr.hbm [resolvable:$true] %s1404
          %1407 = dma.vmem_to_hbm [thread:$0]  %s1403, 32, %s1405, [#allocation3]
        $region60: #{stdp_run.1} parent=47 // pred_fallthru
          _
        // Predicated region
        $region61: #{stdp_run.1} parent=47 // pred_check
          %p1408 = pneg %p239
        $region62: #{stdp_run.1} parent=47 // pred_check_branch
          %1410 = sbr.rel (%p1408) target = $region64
        $region63: #{stdp_run.1} parent=47 // pred_region
          _
        $region64: #{stdp_run.1} parent=47 // pred_fallthru
          _
        // Predicated region
        $region65: #{stdp_run.1} parent=47 // pred_check
          %p1411 = pneg %p260
        $region66: #{stdp_run.1} parent=47 // pred_check_branch
          %1413 = sbr.rel (%p1411) target = $region68
        $region67: #{stdp_run.1} parent=47 // pred_region
          %1415 = vsyncadd [#allocation5], 0
          %s1416 = sshll.u32 [#allocation4], 4
          %s1417 = int_to_ptr.vmem [resolvable:$true] %s1416
          %s1418 = sshll.u32 %s10, 4
          %s1419 = int_to_ptr.hbm [resolvable:$true] %s1418
          %1424 = dma.vmem_to_hbm [thread:$0]  %s1417, 256, %s1419, [#allocation5], 128, 128, 8
        $region68: #{stdp_run.1} parent=47 // pred_fallthru
          _
        // Predicated region
        $region69: #{stdp_run.1} parent=47 // pred_check
          %p1425 = pneg %p281
        $region70: #{stdp_run.1} parent=47 // pred_check_branch
          %1427 = sbr.rel (%p1425) target = $region72
        $region71: #{stdp_run.1} parent=47 // pred_region
          %1429 = vsyncadd [#allocation5], 0
          %s1431 = sshll.u32 [#allocation6], 4
          %s1432 = int_to_ptr.vmem [resolvable:$true] %s1431
          %s1433 = sshll.u32 %s11, 4
          %s1434 = int_to_ptr.hbm [resolvable:$true] %s1433
          %1436 = dma.vmem_to_hbm [thread:$0]  %s1432, 32, %s1434, [#allocation5]
        $region72: #{stdp_run.1} parent=47 // pred_fallthru
          _
        // Predicated region
        $region73: #{stdp_run.1} parent=47 // pred_check
          %p1437 = pneg %p302
        $region74: #{stdp_run.1} parent=47 // pred_check_branch
          %1439 = sbr.rel (%p1437) target = $region76
        $region75: #{stdp_run.1} parent=47 // pred_region
          _
        $region76: #{stdp_run.1} parent=47 // pred_fallthru
          _
        // Predicated region
        $region77: #{stdp_run.1} parent=47 // pred_check
          %p1440 = pneg %p323
        $region78: #{stdp_run.1} parent=47 // pred_check_branch
          %1442 = sbr.rel (%p1440) target = $region80
        $region79: #{stdp_run.1} parent=47 // pred_region
          _
        $region80: #{stdp_run.1} parent=47 // pred_fallthru
          _
        // Predicated region
        $region81: #{stdp_run.1} parent=47 // pred_check
          %p1443 = pneg %p218
        $region82: #{stdp_run.1} parent=47 // pred_check_branch
          %1445 = sbr.rel (%p1443) target = $region84
        $region83: #{stdp_run.1} parent=47 // pred_region
          %1447 = dma.done [#allocation3], 32
        $region84: #{stdp_run.1} parent=47 // pred_fallthru
          _
        // Predicated region
        $region85: #{stdp_run.1} parent=47 // pred_check
          %p1448 = pneg %p239
        $region86: #{stdp_run.1} parent=47 // pred_check_branch
          %1450 = sbr.rel (%p1448) target = $region88
        $region87: #{stdp_run.1} parent=47 // pred_region
          _
        $region88: #{stdp_run.1} parent=47 // pred_fallthru
          _
        // Predicated region
        $region89: #{stdp_run.1} parent=47 // pred_check
          %p1451 = pneg %p260
        $region90: #{stdp_run.1} parent=47 // pred_check_branch
          %1453 = sbr.rel (%p1451) target = $region92
        $region91: #{stdp_run.1} parent=47 // pred_region
          %1455 = dma.done [#allocation5], 256
        $region92: #{stdp_run.1} parent=47 // pred_fallthru
          _
        // Predicated region
        $region93: #{stdp_run.1} parent=47 // pred_check
          %p1456 = pneg %p281
        $region94: #{stdp_run.1} parent=47 // pred_check_branch
          %1458 = sbr.rel (%p1456) target = $region96
        $region95: #{stdp_run.1} parent=47 // pred_region
          %1460 = dma.done [#allocation5], 32
        $region96: #{stdp_run.1} parent=47 // pred_fallthru
          _
        // Predicated region
        $region97: #{stdp_run.1} parent=47 // pred_check
          %p1461 = pneg %p302
        $region98: #{stdp_run.1} parent=47 // pred_check_branch
          %1463 = sbr.rel (%p1461) target = $region100
        $region99: #{stdp_run.1} parent=47 // pred_region
          _
        $region100: #{stdp_run.1} parent=47 // pred_fallthru
          _
        // Predicated region
        $region101: #{stdp_run.1} parent=47 // pred_check
          %p1464 = pneg %p323
        $region102: #{stdp_run.1} parent=47 // pred_check_branch
          %1466 = sbr.rel (%p1464) target = $region104
        $region103: #{stdp_run.1} parent=47 // pred_region
          _
        $region104: #{stdp_run.1} parent=47 // pred_fallthru
          _
      $region48: #{stdp_run.1} parent=5 // pred_fallthru
        _
      %p1467 = scmp.le.s32.totalorder 2, %s22
      // Predicated region
      $region105: #{stdp_run.1} parent=5 // pred_check
        %p1468 = pneg %p1467
      $region106: #{stdp_run.1} parent=5 // pred_check_branch
        %1470 = sbr.rel (%p1468) target = $region108
      $region107: #{stdp_run.1} parent=5 // pred_region
        %s1471 = ssub.s32 %s22, 2
        // Predicated region
        $region109: #{stdp_run.1} parent=107 // pred_check
          %p1472 = pneg %p203
        $region110: #{stdp_run.1} parent=107 // pred_check_branch
          %1474 = sbr.rel (%p1472) target = $region112
        $region111: #{stdp_run.1} parent=107 // pred_region
          %s1475 = smul.u32 8, %s28
          %p1476 = scmp.lt.s32.totalorder %s1475, 63
          %s1477 = scalar_select %p1476, %s1475, 63
          %s1478 = smul.addr %s1477, 2
          %s1479 = smul.addr %s1478, 8
          %s1480 = scalar_lea.vmem %s7, %s1479
        $region112: #{stdp_run.1} parent=107 // pred_fallthru
          _
      $region108: #{stdp_run.1} parent=5 // pred_fallthru
        _
    $region6: #{stdp_run.1} parent=1 // loop_footer
      %s26 = sadd.s32 1, %s22
    $region7: #{stdp_run.1} parent=1 // loop_footer_branch
      %21 = sbr.rel target = $region3
    $region8: #{stdp_run.1} parent=1 // loop_exit
      _
    %1481 = vsyncpa [#allocation3], 1
    %s1482 = scalar_lea.sflag [#allocation3], 1
    %1483 = vsyncpa %s1482, 1
    %1484 = vsyncpa [#allocation5], 1

</llo_original>
